<compile_context>
chip_gen: v6e
topology: v6e:2x2x1
jax: 0.10.0
libtpu: 0.0.40
codegen_flags: <defaults>
</compile_context>

<pallas_src>
import functools

import jax
import jax.numpy as jnp
from jax.experimental import pallas as pl
from jax.experimental.pallas import tpu as pltpu

MXU_DTYPE = jnp.bfloat16          # MXU input dtype (f32 accumulate everywhere)
VMEM_LIMIT = 32 * 1024 * 1024     # explicit scoped-VMEM budget (safe on v5e/v6e/v7x)

_CONV_CFG = (                      # (out_ch, kernel, stride, pad) = the nn.Sequential
    (32, 8, 4, 1),
    (64, 4, 2, 1),
    (64, 3, 1, 1),
)


def _round_up(x, m):
    return (x + m - 1) // m * m


def _pad_and_tile(dim, align, max_tile):
    """Pad `dim` to `align`; return (padded_dim, tile) with padded % tile == 0."""
    p = _round_up(dim, align)
    if p <= max_tile:
        return p, p
    return _round_up(p, max_tile), max_tile


# --------------------------------------------------------------------------
# Fused matmul + bias + activation kernel (used for the three conv layers).
# --------------------------------------------------------------------------
def _matmul_bias_act_kernel(x_ref, w_ref, b_ref, o_ref, acc_ref, *,
                            activation, x_scale):
    k = pl.program_id(2)

    @pl.when(k == 0)
    def _init():
        acc_ref[...] = jnp.zeros_like(acc_ref)

    acc_ref[...] += jnp.dot(x_ref[...], w_ref[...],
                            preferred_element_type=jnp.float32)

    @pl.when(k == pl.num_programs(2) - 1)
    def _finalize():
        acc = acc_ref[...]
        if x_scale != 1.0:                      # conv1: x/255 fused (linear in x)
            acc = acc * jnp.float32(x_scale)
        acc = acc + b_ref[...]
        if activation == "relu":
            acc = jnp.maximum(acc, 0.0)
        elif activation == "tanh":
            acc = jnp.tanh(acc)
        o_ref[...] = acc.astype(o_ref.dtype)


def fused_matmul_bias_act(x, w, b, *, activation="none", x_scale=1.0,
                          tm_max=256, tn_max=256, tk_max=1024):
    """act(x_scale * (x @ w) + b) with bf16 MXU inputs and f32 accumulation."""
    M, K = x.shape
    Kw, N = w.shape
    assert K == Kw and b.shape == (N,)

    Mp, tm = _pad_and_tile(M, 8, tm_max)
    Np, tn = _pad_and_tile(N, 128, tn_max)
    Kp, tk = _pad_and_tile(K, 128, tk_max)

    xp = jnp.pad(x, ((0, Mp - M), (0, Kp - K))).astype(MXU_DTYPE)
    wp = jnp.pad(w, ((0, Kp - K), (0, Np - N))).astype(MXU_DTYPE)
    bp = jnp.pad(b, ((0, Np - N),)).astype(jnp.float32).reshape(1, Np)

    kernel = functools.partial(_matmul_bias_act_kernel,
                               activation=activation, x_scale=x_scale)
    out = pl.pallas_call(
        kernel,
        out_shape=jax.ShapeDtypeStruct((Mp, Np), jnp.float32),
        grid_spec=pltpu.PrefetchScalarGridSpec(
            num_scalar_prefetch=0,
            grid=(Mp // tm, Np // tn, Kp // tk),
            in_specs=[
                pl.BlockSpec((tm, tk), lambda i, j, k: (i, k)),
                pl.BlockSpec((tk, tn), lambda i, j, k: (k, j)),
                pl.BlockSpec((1, tn), lambda i, j, k: (0, j)),
            ],
            out_specs=pl.BlockSpec((tm, tn), lambda i, j, k: (i, j)),
            scratch_shapes=[pltpu.VMEM((tm, tn), jnp.float32)],
        ),
        compiler_params=pltpu.CompilerParams(
            dimension_semantics=("parallel", "parallel", "arbitrary"),
            vmem_limit_bytes=VMEM_LIMIT),
    )(xp, wp, bp)
    return out[:M, :N]


# --------------------------------------------------------------------------
# Fused MLP policy head: fc1+tanh -> fc2+tanh -> fc3+softmax in one kernel.
# --------------------------------------------------------------------------
def _mlp_softmax_kernel(x_ref, w1_ref, b1_ref, w2_ref, b2_ref, w3_ref, b3_ref,
                        o_ref, *, n_actions):
    h = jnp.dot(x_ref[...], w1_ref[...], preferred_element_type=jnp.float32)
    h = jnp.tanh(h + b1_ref[...])
    h = jnp.dot(h.astype(w2_ref.dtype), w2_ref[...],
                preferred_element_type=jnp.float32)
    h = jnp.tanh(h + b2_ref[...])
    logits = jnp.dot(h.astype(w3_ref.dtype), w3_ref[...],
                     preferred_element_type=jnp.float32) + b3_ref[...]
    # Masked, max-subtracted softmax over the (lane-padded to 128) action dim.
    lane = jax.lax.broadcasted_iota(jnp.int32, logits.shape, 1)
    valid = lane < n_actions
    logits = jnp.where(valid, logits, -1e30)
    m = jnp.max(logits, axis=-1, keepdims=True)
    e = jnp.where(valid, jnp.exp(logits - m), 0.0)
    denom = jnp.sum(e, axis=-1, keepdims=True)
    o_ref[...] = (e * pl.reciprocal(denom, approx=True)).astype(o_ref.dtype)


def mlp_policy_head(feat, w1, b1, w2, b2, w3, b3, *, tm_max=256):
    B, F = feat.shape
    L1, L2, A = w1.shape[1], w2.shape[1], w3.shape[1]

    Bp, tm = _pad_and_tile(B, 8, tm_max)
    Fp = _round_up(F, 128)
    L1p = _round_up(L1, 128)
    L2p = _round_up(L2, 128)
    Ap = _round_up(A, 128)

    xp = jnp.pad(feat, ((0, Bp - B), (0, Fp - F))).astype(MXU_DTYPE)
    w1p = jnp.pad(w1, ((0, Fp - F), (0, L1p - L1))).astype(MXU_DTYPE)
    w2p = jnp.pad(w2, ((0, L1p - L1), (0, L2p - L2))).astype(MXU_DTYPE)
    w3p = jnp.pad(w3, ((0, L2p - L2), (0, Ap - A))).astype(MXU_DTYPE)
    b1p = jnp.pad(b1, ((0, L1p - L1),)).astype(jnp.float32).reshape(1, L1p)
    b2p = jnp.pad(b2, ((0, L2p - L2),)).astype(jnp.float32).reshape(1, L2p)
    b3p = jnp.pad(b3, ((0, Ap - A),)).astype(jnp.float32).reshape(1, Ap)

    kernel = functools.partial(_mlp_softmax_kernel, n_actions=A)
    out = pl.pallas_call(
        kernel,
        out_shape=jax.ShapeDtypeStruct((Bp, Ap), jnp.float32),
        grid_spec=pltpu.PrefetchScalarGridSpec(
            num_scalar_prefetch=0,
            grid=(Bp // tm,),
            in_specs=[
                pl.BlockSpec((tm, Fp), lambda i: (i, 0)),
                pl.BlockSpec((Fp, L1p), lambda i: (0, 0)),
                pl.BlockSpec((1, L1p), lambda i: (0, 0)),
                pl.BlockSpec((L1p, L2p), lambda i: (0, 0)),
                pl.BlockSpec((1, L2p), lambda i: (0, 0)),
                pl.BlockSpec((L2p, Ap), lambda i: (0, 0)),
                pl.BlockSpec((1, Ap), lambda i: (0, 0)),
            ],
            out_specs=pl.BlockSpec((tm, Ap), lambda i: (i, 0)),
        ),
        compiler_params=pltpu.CompilerParams(
            dimension_semantics=("parallel",),
            vmem_limit_bytes=VMEM_LIMIT),
    )(xp, w1p, b1p, w2p, b2p, w3p, b3p)
    return out[:B, :A]


# --------------------------------------------------------------------------
# In-jit, channels-last im2col (patch feature ordering: kh, kw, c).
# --------------------------------------------------------------------------
def _im2col_nhwc(x, kh, kw, stride, padding):
    B, H, W, C = x.shape
    xp = jnp.pad(x, ((0, 0), (padding, padding), (padding, padding), (0, 0)))
    Hp, Wp = H + 2 * padding, W + 2 * padding
    OH = (Hp - kh) // stride + 1
    OW = (Wp - kw) // stride + 1
    cols = []
    for i in range(kh):
        for j in range(kw):
            sl = jax.lax.slice(
                xp, (0, i, j, 0),
                (B, i + (OH - 1) * stride + 1, j + (OW - 1) * stride + 1, C),
                (1, stride, stride, 1))
            cols.append(sl)                       # (B, OH, OW, C)
    patches = jnp.concatenate(cols, axis=-1)      # (B, OH, OW, KH*KW*C)
    return patches.reshape(B * OH * OW, kh * kw * C), OH, OW


# --------------------------------------------------------------------------
# Actor forward pass.
# --------------------------------------------------------------------------
def actor_forward(params, x_nchw):
    """x_nchw: (B, C, H, W) float32 pixels in [0, 255] -> action probabilities."""
    x = jnp.transpose(x_nchw, (0, 2, 3, 1)).astype(jnp.float32)   # NCHW -> NHWC
    B = x.shape[0]
    for li, (oc, k, s, p) in enumerate(_CONV_CFG):
        patches, oh, ow = _im2col_nhwc(x, k, k, s, p)
        y = fused_matmul_bias_act(
            patches, params[f"conv{li + 1}_w"], params[f"conv{li + 1}_b"],
            activation="relu",
            x_scale=(1.0 / 255.0) if li == 0 else 1.0)
        x = y.reshape(B, oh, ow, oc)
    feat = x.reshape(B, -1)    # NHWC flatten; fc1 weights were permuted to match
    probs = mlp_policy_head(
        feat,
        params["fc1_w"], params["fc1_b"],
        params["fc2_w"], params["fc2_b"],
        params["fc3_w"], params["fc3_b"])
    # TODO(synk): torch.distributions.Categorical(probs) has no Pallas
    # equivalent; return the probabilities it would be constructed from.
    return probs


actor_forward_jit = jax.jit(actor_forward)


# --------------------------------------------------------------------------
# Parameter construction (PyTorch layouts) and remap to matmul layouts.
# --------------------------------------------------------------------------
def _conv_out(h, k, s, p):
    return (h + 2 * p - k) // s + 1


def init_torch_layout_params(key, obs_shape, layer1_dims, layer2_dims, n_actions):
    c_in, h, w = obs_shape
    keys = jax.random.split(key, 12)
    params = {}
    cin, hh, ww = c_in, h, w
    for li, (oc, k, s, p) in enumerate(_CONV_CFG):
        params[f"conv{li + 1}_w"] = 0.05 * jax.random.normal(
            keys[2 * li], (oc, cin, k, k), jnp.float32)
        params[f"conv{li + 1}_b"] = 0.05 * jax.random.normal(
            keys[2 * li + 1], (oc,), jnp.float32)
        cin, hh, ww = oc, _conv_out(hh, k, s, p), _conv_out(ww, k, s, p)
    n_flatten = cin * hh * ww            # == CNN.out_dims (NCHW flatten)
    dims = [n_flatten, layer1_dims, layer2_dims, n_actions]
    for li in range(3):
        params[f"fc{li + 1}_w"] = 0.05 * jax.random.normal(
            keys[6 + 2 * li], (dims[li + 1], dims[li]), jnp.float32)
        params[f"fc{li + 1}_b"] = 0.05 * jax.random.normal(
            keys[7 + 2 * li], (dims[li + 1],), jnp.float32)
    meta = dict(c3=cin, h3=hh, w3=ww, n_flatten=n_flatten)
    return params, meta


def prepare_matmul_params(tparams, meta):
    p = {}
    for li, (oc, _, _, _) in enumerate(_CONV_CFG):
        w = tparams[f"conv{li + 1}_w"]                            # (OC,C,KH,KW)
        p[f"conv{li + 1}_w"] = jnp.transpose(w, (2, 3, 1, 0)).reshape(-1, oc)
        p[f"conv{li + 1}_b"] = tparams[f"conv{li + 1}_b"]
    c3, h3, w3 = meta["c3"], meta["h3"], meta["w3"]
    # fc1: PyTorch flatten order is (c,h,w); NHWC flatten is (h,w,c) -> permute.
    w1 = tparams["fc1_w"].reshape(-1, c3, h3, w3)                 # (L1,C,H,W)
    p["fc1_w"] = jnp.transpose(w1, (0, 2, 3, 1)).reshape(w1.shape[0], -1).T
    p["fc1_b"] = tparams["fc1_b"]
    p["fc2_w"] = tparams["fc2_w"].T
    p["fc2_b"] = tparams["fc2_b"]
    p["fc3_w"] = tparams["fc3_w"].T
    p["fc3_b"] = tparams["fc3_b"]
    return p


if __name__ == "__main__":
    key = jax.random.PRNGKey(0)
    kp, kx = jax.random.split(key)

    obs_shape = (4, 36, 36)        # 4 stacked frames; conv stack -> 64*4*4 = 1024 feats
    batch = 2
    layer1_dims, layer2_dims, n_actions = 64, 64, 6

    tparams, meta = init_torch_layout_params(
        kp, obs_shape, layer1_dims, layer2_dims, n_actions)
    params = prepare_matmul_params(tparams, meta)

    x = jax.random.uniform(kx, (batch,) + obs_shape,
                           dtype=jnp.float32, minval=0.0, maxval=255.0)

    probs = jax.block_until_ready(actor_forward_jit(params, x))

    assert probs.shape == (batch, n_actions), probs.shape
    assert bool(jnp.all(jnp.isfinite(probs)))
    row_sums = jnp.sum(probs, axis=-1)
    assert bool(jnp.all(jnp.abs(row_sums - 1.0) < 1e-2)), row_sums
    print("KERNEL_OK")
</pallas_src>

<mosaic_0001>
module attributes {stable_mosaic.version = 11 : i64} {
  func.func @_matmul_bias_act_kernel(%arg0: i32, %arg1: i32, %arg2: i32, %arg3: memref<128x256xbf16, #tpu.memory_space<vmem>>, %arg4: memref<256x128xbf16, #tpu.memory_space<vmem>>, %arg5: memref<1x128xf32, #tpu.memory_space<vmem>>, %arg6: memref<128x128xf32, #tpu.memory_space<vmem>>, %arg7: memref<128x128xf32, #tpu.memory_space<vmem>>) attributes {dimension_semantics = [#tpu.dimension_semantics<parallel>, #tpu.dimension_semantics<parallel>, #tpu.dimension_semantics<arbitrary>], iteration_bounds = array<i64: 1, 1, 1>, scalar_prefetch = 0 : i64, scratch_operands = 1 : i64, tpu.core_type = #tpu.core_type<tc>, window_params = [{transform_indices = @transform_0, window_bounds = array<i64: 128, 256>}, {transform_indices = @transform_1, window_bounds = array<i64: 256, 128>}, {transform_indices = @transform_2, window_bounds = array<i64: 1, 128>}, {transform_indices = @transform_3, window_bounds = array<i64: 128, 128>}]} {
    %c0_i32 = arith.constant 0 : i32
    %0 = arith.cmpi eq, %arg2, %c0_i32 : i32
    %1 = arith.extui %0 : i1 to i32
    %c0_i32_0 = arith.constant 0 : i32
    %2 = arith.cmpi ne, %1, %c0_i32_0 : i32
    scf.if %2 {
      %cst_10 = arith.constant 0.000000e+00 : f32
      %12 = vector.broadcast %cst_10 : f32 to vector<128x128xf32>
      %c0_11 = arith.constant 0 : index
      %c0_12 = arith.constant 0 : index
      %13 = vector.load %arg7[%c0_11, %c0_12] : memref<128x128xf32, #tpu.memory_space<vmem>>, vector<128x128xf32>
      tpu.vector_store %arg7[%c0_11, %c0_12], %12 {strides = array<i32>} : memref<128x128xf32, #tpu.memory_space<vmem>>, vector<128x128xf32>,
    } else {
    }
    %c0 = arith.constant 0 : index
    %c0_1 = arith.constant 0 : index
    %3 = vector.load %arg7[%c0, %c0_1] : memref<128x128xf32, #tpu.memory_space<vmem>>, vector<128x128xf32>
    %c0_2 = arith.constant 0 : index
    %c0_3 = arith.constant 0 : index
    %4 = vector.load %arg3[%c0_2, %c0_3] : memref<128x256xbf16, #tpu.memory_space<vmem>>, vector<128x256xbf16>
    %c0_4 = arith.constant 0 : index
    %c0_5 = arith.constant 0 : index
    %5 = vector.load %arg4[%c0_4, %c0_5] : memref<256x128xbf16, #tpu.memory_space<vmem>>, vector<256x128xbf16>
    %cst = arith.constant dense<0.000000e+00> : vector<128x128xf32>
    %6 = tpu.matmul %4, %5, %cst {dimension_numbers = #tpu.dot_dimension_numbers<[1], [0], [0], [1], [0, 0, 1, 1], [], []>} : vector<128x256xbf16>, vector<256x128xbf16>, vector<128x128xf32> -> vector<128x128xf32>
    %7 = arith.addf %3, %6 : vector<128x128xf32>
    %c0_6 = arith.constant 0 : index
    %c0_7 = arith.constant 0 : index
    %8 = vector.load %arg7[%c0_6, %c0_7] : memref<128x128xf32, #tpu.memory_space<vmem>>, vector<128x128xf32>
    tpu.vector_store %arg7[%c0_6, %c0_7], %7 {strides = array<i32>} : memref<128x128xf32, #tpu.memory_space<vmem>>, vector<128x128xf32>,
    %c0_i32_8 = arith.constant 0 : i32
    %9 = arith.cmpi eq, %arg2, %c0_i32_8 : i32
    %10 = arith.extui %9 : i1 to i32
    %c0_i32_9 = arith.constant 0 : i32
    %11 = arith.cmpi ne, %10, %c0_i32_9 : i32
    scf.if %11 {
      %c0_10 = arith.constant 0 : index
      %c0_11 = arith.constant 0 : index
      %12 = vector.load %arg7[%c0_10, %c0_11] : memref<128x128xf32, #tpu.memory_space<vmem>>, vector<128x128xf32>
      %cst_12 = arith.constant 0.00392156886 : f32
      %13 = vector.broadcast %cst_12 : f32 to vector<128x128xf32>
      %14 = arith.mulf %12, %13 : vector<128x128xf32>
      %c0_13 = arith.constant 0 : index
      %c0_14 = arith.constant 0 : index
      %15 = vector.load %arg5[%c0_13, %c0_14] : memref<1x128xf32, #tpu.memory_space<vmem>>, vector<1x128xf32>
      %16 = vector.broadcast %15 : vector<1x128xf32> to vector<128x128xf32>
      %17 = arith.addf %14, %16 : vector<128x128xf32>
      %cst_15 = arith.constant 0.000000e+00 : f32
      %18 = vector.broadcast %cst_15 : f32 to vector<128x128xf32>
      %19 = arith.maximumf %17, %18 : vector<128x128xf32>
      %c0_16 = arith.constant 0 : index
      %c0_17 = arith.constant 0 : index
      %20 = vector.load %arg6[%c0_16, %c0_17] : memref<128x128xf32, #tpu.memory_space<vmem>>, vector<128x128xf32>
      tpu.vector_store %arg6[%c0_16, %c0_17], %19 {strides = array<i32>} : memref<128x128xf32, #tpu.memory_space<vmem>>, vector<128x128xf32>,
    } else {
    }
    return
  }
  func.func @transform_0(%arg0: i32, %arg1: i32, %arg2: i32) -> (i32, i32) {
    %c0_i32 = arith.constant 0 : i32
    return %arg0, %arg2 : i32, i32
  }
  func.func @transform_1(%arg0: i32, %arg1: i32, %arg2: i32) -> (i32, i32) {
    %c0_i32 = arith.constant 0 : i32
    return %arg2, %arg1 : i32, i32
  }
  func.func @transform_2(%arg0: i32, %arg1: i32, %arg2: i32) -> (i32, i32) {
    %c0_i32 = arith.constant 0 : i32
    %c0_i32_0 = arith.constant 0 : i32
    return %c0_i32, %arg1 : i32, i32
  }
  func.func @transform_3(%arg0: i32, %arg1: i32, %arg2: i32) -> (i32, i32) {
    %c0_i32 = arith.constant 0 : i32
    return %arg0, %arg1 : i32, i32
  }
}

module attributes {stable_mosaic.version = 11 : i64} {
  func.func @_matmul_bias_act_kernel(%arg0: i32, %arg1: i32, %arg2: i32, %arg3: memref<32x512xbf16, #tpu.memory_space<vmem>>, %arg4: memref<512x128xbf16, #tpu.memory_space<vmem>>, %arg5: memref<1x128xf32, #tpu.memory_space<vmem>>, %arg6: memref<32x128xf32, #tpu.memory_space<vmem>>, %arg7: memref<32x128xf32, #tpu.memory_space<vmem>>) attributes {dimension_semantics = [#tpu.dimension_semantics<parallel>, #tpu.dimension_semantics<parallel>, #tpu.dimension_semantics<arbitrary>], iteration_bounds = array<i64: 1, 1, 1>, scalar_prefetch = 0 : i64, scratch_operands = 1 : i64, tpu.core_type = #tpu.core_type<tc>, window_params = [{transform_indices = @transform_0, window_bounds = array<i64: 32, 512>}, {transform_indices = @transform_1, window_bounds = array<i64: 512, 128>}, {transform_indices = @transform_2, window_bounds = array<i64: 1, 128>}, {transform_indices = @transform_3, window_bounds = array<i64: 32, 128>}]} {
    %c0_i32 = arith.constant 0 : i32
    %0 = arith.cmpi eq, %arg2, %c0_i32 : i32
    %1 = arith.extui %0 : i1 to i32
    %c0_i32_0 = arith.constant 0 : i32
    %2 = arith.cmpi ne, %1, %c0_i32_0 : i32
    scf.if %2 {
      %cst_10 = arith.constant 0.000000e+00 : f32
      %12 = vector.broadcast %cst_10 : f32 to vector<32x128xf32>
      %c0_11 = arith.constant 0 : index
      %c0_12 = arith.constant 0 : index
      %13 = vector.load %arg7[%c0_11, %c0_12] : memref<32x128xf32, #tpu.memory_space<vmem>>, vector<32x128xf32>
      tpu.vector_store %arg7[%c0_11, %c0_12], %12 {strides = array<i32>} : memref<32x128xf32, #tpu.memory_space<vmem>>, vector<32x128xf32>,
    } else {
    }
    %c0 = arith.constant 0 : index
    %c0_1 = arith.constant 0 : index
    %3 = vector.load %arg7[%c0, %c0_1] : memref<32x128xf32, #tpu.memory_space<vmem>>, vector<32x128xf32>
    %c0_2 = arith.constant 0 : index
    %c0_3 = arith.constant 0 : index
    %4 = vector.load %arg3[%c0_2, %c0_3] : memref<32x512xbf16, #tpu.memory_space<vmem>>, vector<32x512xbf16>
    %c0_4 = arith.constant 0 : index
    %c0_5 = arith.constant 0 : index
    %5 = vector.load %arg4[%c0_4, %c0_5] : memref<512x128xbf16, #tpu.memory_space<vmem>>, vector<512x128xbf16>
    %cst = arith.constant dense<0.000000e+00> : vector<32x128xf32>
    %6 = tpu.matmul %4, %5, %cst {dimension_numbers = #tpu.dot_dimension_numbers<[1], [0], [0], [1], [0, 0, 1, 1], [], []>} : vector<32x512xbf16>, vector<512x128xbf16>, vector<32x128xf32> -> vector<32x128xf32>
    %7 = arith.addf %3, %6 : vector<32x128xf32>
    %c0_6 = arith.constant 0 : index
    %c0_7 = arith.constant 0 : index
    %8 = vector.load %arg7[%c0_6, %c0_7] : memref<32x128xf32, #tpu.memory_space<vmem>>, vector<32x128xf32>
    tpu.vector_store %arg7[%c0_6, %c0_7], %7 {strides = array<i32>} : memref<32x128xf32, #tpu.memory_space<vmem>>, vector<32x128xf32>,
    %c0_i32_8 = arith.constant 0 : i32
    %9 = arith.cmpi eq, %arg2, %c0_i32_8 : i32
    %10 = arith.extui %9 : i1 to i32
    %c0_i32_9 = arith.constant 0 : i32
    %11 = arith.cmpi ne, %10, %c0_i32_9 : i32
    scf.if %11 {
      %c0_10 = arith.constant 0 : index
      %c0_11 = arith.constant 0 : index
      %12 = vector.load %arg7[%c0_10, %c0_11] : memref<32x128xf32, #tpu.memory_space<vmem>>, vector<32x128xf32>
      %c0_12 = arith.constant 0 : index
      %c0_13 = arith.constant 0 : index
      %13 = vector.load %arg5[%c0_12, %c0_13] : memref<1x128xf32, #tpu.memory_space<vmem>>, vector<1x128xf32>
      %14 = vector.broadcast %13 : vector<1x128xf32> to vector<32x128xf32>
      %15 = arith.addf %12, %14 : vector<32x128xf32>
      %cst_14 = arith.constant 0.000000e+00 : f32
      %16 = vector.broadcast %cst_14 : f32 to vector<32x128xf32>
      %17 = arith.maximumf %15, %16 : vector<32x128xf32>
      %c0_15 = arith.constant 0 : index
      %c0_16 = arith.constant 0 : index
      %18 = vector.load %arg6[%c0_15, %c0_16] : memref<32x128xf32, #tpu.memory_space<vmem>>, vector<32x128xf32>
      tpu.vector_store %arg6[%c0_15, %c0_16], %17 {strides = array<i32>} : memref<32x128xf32, #tpu.memory_space<vmem>>, vector<32x128xf32>,
    } else {
    }
    return
  }
  func.func @transform_0(%arg0: i32, %arg1: i32, %arg2: i32) -> (i32, i32) {
    %c0_i32 = arith.constant 0 : i32
    return %arg0, %arg2 : i32, i32
  }
  func.func @transform_1(%arg0: i32, %arg1: i32, %arg2: i32) -> (i32, i32) {
    %c0_i32 = arith.constant 0 : i32
    return %arg2, %arg1 : i32, i32
  }
  func.func @transform_2(%arg0: i32, %arg1: i32, %arg2: i32) -> (i32, i32) {
    %c0_i32 = arith.constant 0 : i32
    %c0_i32_0 = arith.constant 0 : i32
    return %c0_i32, %arg1 : i32, i32
  }
  func.func @transform_3(%arg0: i32, %arg1: i32, %arg2: i32) -> (i32, i32) {
    %c0_i32 = arith.constant 0 : i32
    return %arg0, %arg1 : i32, i32
  }
}

module attributes {stable_mosaic.version = 11 : i64} {
  func.func @_matmul_bias_act_kernel(%arg0: i32, %arg1: i32, %arg2: i32, %arg3: memref<32x640xbf16, #tpu.memory_space<vmem>>, %arg4: memref<640x128xbf16, #tpu.memory_space<vmem>>, %arg5: memref<1x128xf32, #tpu.memory_space<vmem>>, %arg6: memref<32x128xf32, #tpu.memory_space<vmem>>, %arg7: memref<32x128xf32, #tpu.memory_space<vmem>>) attributes {dimension_semantics = [#tpu.dimension_semantics<parallel>, #tpu.dimension_semantics<parallel>, #tpu.dimension_semantics<arbitrary>], iteration_bounds = array<i64: 1, 1, 1>, scalar_prefetch = 0 : i64, scratch_operands = 1 : i64, tpu.core_type = #tpu.core_type<tc>, window_params = [{transform_indices = @transform_0, window_bounds = array<i64: 32, 640>}, {transform_indices = @transform_1, window_bounds = array<i64: 640, 128>}, {transform_indices = @transform_2, window_bounds = array<i64: 1, 128>}, {transform_indices = @transform_3, window_bounds = array<i64: 32, 128>}]} {
    %c0_i32 = arith.constant 0 : i32
    %0 = arith.cmpi eq, %arg2, %c0_i32 : i32
    %1 = arith.extui %0 : i1 to i32
    %c0_i32_0 = arith.constant 0 : i32
    %2 = arith.cmpi ne, %1, %c0_i32_0 : i32
    scf.if %2 {
      %cst_10 = arith.constant 0.000000e+00 : f32
      %12 = vector.broadcast %cst_10 : f32 to vector<32x128xf32>
      %c0_11 = arith.constant 0 : index
      %c0_12 = arith.constant 0 : index
      %13 = vector.load %arg7[%c0_11, %c0_12] : memref<32x128xf32, #tpu.memory_space<vmem>>, vector<32x128xf32>
      tpu.vector_store %arg7[%c0_11, %c0_12], %12 {strides = array<i32>} : memref<32x128xf32, #tpu.memory_space<vmem>>, vector<32x128xf32>,
    } else {
    }
    %c0 = arith.constant 0 : index
    %c0_1 = arith.constant 0 : index
    %3 = vector.load %arg7[%c0, %c0_1] : memref<32x128xf32, #tpu.memory_space<vmem>>, vector<32x128xf32>
    %c0_2 = arith.constant 0 : index
    %c0_3 = arith.constant 0 : index
    %4 = vector.load %arg3[%c0_2, %c0_3] : memref<32x640xbf16, #tpu.memory_space<vmem>>, vector<32x640xbf16>
    %c0_4 = arith.constant 0 : index
    %c0_5 = arith.constant 0 : index
    %5 = vector.load %arg4[%c0_4, %c0_5] : memref<640x128xbf16, #tpu.memory_space<vmem>>, vector<640x128xbf16>
    %cst = arith.constant dense<0.000000e+00> : vector<32x128xf32>
    %6 = tpu.matmul %4, %5, %cst {dimension_numbers = #tpu.dot_dimension_numbers<[1], [0], [0], [1], [0, 0, 1, 1], [], []>} : vector<32x640xbf16>, vector<640x128xbf16>, vector<32x128xf32> -> vector<32x128xf32>
    %7 = arith.addf %3, %6 : vector<32x128xf32>
    %c0_6 = arith.constant 0 : index
    %c0_7 = arith.constant 0 : index
    %8 = vector.load %arg7[%c0_6, %c0_7] : memref<32x128xf32, #tpu.memory_space<vmem>>, vector<32x128xf32>
    tpu.vector_store %arg7[%c0_6, %c0_7], %7 {strides = array<i32>} : memref<32x128xf32, #tpu.memory_space<vmem>>, vector<32x128xf32>,
    %c0_i32_8 = arith.constant 0 : i32
    %9 = arith.cmpi eq, %arg2, %c0_i32_8 : i32
    %10 = arith.extui %9 : i1 to i32
    %c0_i32_9 = arith.constant 0 : i32
    %11 = arith.cmpi ne, %10, %c0_i32_9 : i32
    scf.if %11 {
      %c0_10 = arith.constant 0 : index
      %c0_11 = arith.constant 0 : index
      %12 = vector.load %arg7[%c0_10, %c0_11] : memref<32x128xf32, #tpu.memory_space<vmem>>, vector<32x128xf32>
      %c0_12 = arith.constant 0 : index
      %c0_13 = arith.constant 0 : index
      %13 = vector.load %arg5[%c0_12, %c0_13] : memref<1x128xf32, #tpu.memory_space<vmem>>, vector<1x128xf32>
      %14 = vector.broadcast %13 : vector<1x128xf32> to vector<32x128xf32>
      %15 = arith.addf %12, %14 : vector<32x128xf32>
      %cst_14 = arith.constant 0.000000e+00 : f32
      %16 = vector.broadcast %cst_14 : f32 to vector<32x128xf32>
      %17 = arith.maximumf %15, %16 : vector<32x128xf32>
      %c0_15 = arith.constant 0 : index
      %c0_16 = arith.constant 0 : index
      %18 = vector.load %arg6[%c0_15, %c0_16] : memref<32x128xf32, #tpu.memory_space<vmem>>, vector<32x128xf32>
      tpu.vector_store %arg6[%c0_15, %c0_16], %17 {strides = array<i32>} : memref<32x128xf32, #tpu.memory_space<vmem>>, vector<32x128xf32>,
    } else {
    }
    return
  }
  func.func @transform_0(%arg0: i32, %arg1: i32, %arg2: i32) -> (i32, i32) {
    %c0_i32 = arith.constant 0 : i32
    return %arg0, %arg2 : i32, i32
  }
  func.func @transform_1(%arg0: i32, %arg1: i32, %arg2: i32) -> (i32, i32) {
    %c0_i32 = arith.constant 0 : i32
    return %arg2, %arg1 : i32, i32
  }
  func.func @transform_2(%arg0: i32, %arg1: i32, %arg2: i32) -> (i32, i32) {
    %c0_i32 = arith.constant 0 : i32
    %c0_i32_0 = arith.constant 0 : i32
    return %c0_i32, %arg1 : i32, i32
  }
  func.func @transform_3(%arg0: i32, %arg1: i32, %arg2: i32) -> (i32, i32) {
    %c0_i32 = arith.constant 0 : i32
    return %arg0, %arg1 : i32, i32
  }
}

module attributes {stable_mosaic.version = 11 : i64} {
  func.func @_mlp_softmax_kernel(%arg0: i32, %arg1: memref<8x1024xbf16, #tpu.memory_space<vmem>>, %arg2: memref<1024x128xbf16, #tpu.memory_space<vmem>>, %arg3: memref<1x128xf32, #tpu.memory_space<vmem>>, %arg4: memref<128x128xbf16, #tpu.memory_space<vmem>>, %arg5: memref<1x128xf32, #tpu.memory_space<vmem>>, %arg6: memref<128x128xbf16, #tpu.memory_space<vmem>>, %arg7: memref<1x128xf32, #tpu.memory_space<vmem>>, %arg8: memref<8x128xf32, #tpu.memory_space<vmem>>) attributes {dimension_semantics = [#tpu.dimension_semantics<parallel>], iteration_bounds = array<i64: 1>, scalar_prefetch = 0 : i64, scratch_operands = 0 : i64, tpu.core_type = #tpu.core_type<tc>, window_params = [{transform_indices = @transform_0, window_bounds = array<i64: 8, 1024>}, {pipeline_mode = #tpu.pipeline_mode<synchronous>, transform_indices = @transform_1, window_bounds = array<i64: 1024, 128>}, {pipeline_mode = #tpu.pipeline_mode<synchronous>, transform_indices = @transform_2, window_bounds = array<i64: 1, 128>}, {pipeline_mode = #tpu.pipeline_mode<synchronous>, transform_indices = @transform_3, window_bounds = array<i64: 128, 128>}, {pipeline_mode = #tpu.pipeline_mode<synchronous>, transform_indices = @transform_4, window_bounds = array<i64: 1, 128>}, {pipeline_mode = #tpu.pipeline_mode<synchronous>, transform_indices = @transform_5, window_bounds = array<i64: 128, 128>}, {pipeline_mode = #tpu.pipeline_mode<synchronous>, transform_indices = @transform_6, window_bounds = array<i64: 1, 128>}, {transform_indices = @transform_7, window_bounds = array<i64: 8, 128>}]} {
    %c0 = arith.constant 0 : index
    %c0_0 = arith.constant 0 : index
    %0 = vector.load %arg1[%c0, %c0_0] : memref<8x1024xbf16, #tpu.memory_space<vmem>>, vector<8x1024xbf16>
    %c0_1 = arith.constant 0 : index
    %c0_2 = arith.constant 0 : index
    %1 = vector.load %arg2[%c0_1, %c0_2] : memref<1024x128xbf16, #tpu.memory_space<vmem>>, vector<1024x128xbf16>
    %cst = arith.constant dense<0.000000e+00> : vector<8x128xf32>
    %2 = tpu.matmul %0, %1, %cst {dimension_numbers = #tpu.dot_dimension_numbers<[1], [0], [0], [1], [0, 0, 1, 1], [], []>} : vector<8x1024xbf16>, vector<1024x128xbf16>, vector<8x128xf32> -> vector<8x128xf32>
    %c0_3 = arith.constant 0 : index
    %c0_4 = arith.constant 0 : index
    %3 = vector.load %arg3[%c0_3, %c0_4] : memref<1x128xf32, #tpu.memory_space<vmem>>, vector<1x128xf32>
    %4 = vector.broadcast %3 : vector<1x128xf32> to vector<8x128xf32>
    %5 = arith.addf %2, %4 : vector<8x128xf32>
    %6 = math.tanh %5 : vector<8x128xf32>
    %7 = arith.truncf %6 : vector<8x128xf32> to vector<8x128xbf16>
    %c0_5 = arith.constant 0 : index
    %c0_6 = arith.constant 0 : index
    %8 = vector.load %arg4[%c0_5, %c0_6] : memref<128x128xbf16, #tpu.memory_space<vmem>>, vector<128x128xbf16>
    %cst_7 = arith.constant dense<0.000000e+00> : vector<8x128xf32>
    %9 = tpu.matmul %7, %8, %cst_7 {dimension_numbers = #tpu.dot_dimension_numbers<[1], [0], [0], [1], [0, 0, 1, 1], [], []>} : vector<8x128xbf16>, vector<128x128xbf16>, vector<8x128xf32> -> vector<8x128xf32>
    %c0_8 = arith.constant 0 : index
    %c0_9 = arith.constant 0 : index
    %10 = vector.load %arg5[%c0_8, %c0_9] : memref<1x128xf32, #tpu.memory_space<vmem>>, vector<1x128xf32>
    %11 = vector.broadcast %10 : vector<1x128xf32> to vector<8x128xf32>
    %12 = arith.addf %9, %11 : vector<8x128xf32>
    %13 = math.tanh %12 : vector<8x128xf32>
    %14 = arith.truncf %13 : vector<8x128xf32> to vector<8x128xbf16>
    %c0_10 = arith.constant 0 : index
    %c0_11 = arith.constant 0 : index
    %15 = vector.load %arg6[%c0_10, %c0_11] : memref<128x128xbf16, #tpu.memory_space<vmem>>, vector<128x128xbf16>
    %cst_12 = arith.constant dense<0.000000e+00> : vector<8x128xf32>
    %16 = tpu.matmul %14, %15, %cst_12 {dimension_numbers = #tpu.dot_dimension_numbers<[1], [0], [0], [1], [0, 0, 1, 1], [], []>} : vector<8x128xbf16>, vector<128x128xbf16>, vector<8x128xf32> -> vector<8x128xf32>
    %c0_13 = arith.constant 0 : index
    %c0_14 = arith.constant 0 : index
    %17 = vector.load %arg7[%c0_13, %c0_14] : memref<1x128xf32, #tpu.memory_space<vmem>>, vector<1x128xf32>
    %18 = vector.broadcast %17 : vector<1x128xf32> to vector<8x128xf32>
    %19 = arith.addf %16, %18 : vector<8x128xf32>
    %20 = tpu.iota {dimensions = array<i32: 1>} : vector<8x128xi32>
    %c6_i32 = arith.constant 6 : i32
    %21 = vector.broadcast %c6_i32 : i32 to vector<8x128xi32>
    %22 = arith.cmpi slt, %20, %21 : vector<8x128xi32>
    %cst_15 = arith.constant -1.000000e+30 : f32
    %23 = vector.broadcast %cst_15 : f32 to vector<8x128xf32>
    %24 = arith.select %22, %19, %23 : vector<8x128xi1>, vector<8x128xf32>
    %cst_16 = arith.constant dense<0xFF800000> : vector<8xf32>
    %25 = vector.multi_reduction <maximumf>, %24, %cst_16 [1] : vector<8x128xf32> to vector<8xf32>
    %26 = vector.shape_cast %25 : vector<8xf32> to vector<8x1xf32>
    %27 = vector.broadcast %26 : vector<8x1xf32> to vector<8x128xf32>
    %28 = arith.subf %24, %27 : vector<8x128xf32>
    %29 = math.exp %28 : vector<8x128xf32>
    %cst_17 = arith.constant 0.000000e+00 : f32
    %30 = vector.broadcast %cst_17 : f32 to vector<8x128xf32>
    %31 = arith.select %22, %29, %30 : vector<8x128xi1>, vector<8x128xf32>
    %cst_18 = arith.constant dense<0.000000e+00> : vector<8xf32>
    %32 = vector.multi_reduction <add>, %31, %cst_18 [1] : vector<8x128xf32> to vector<8xf32>
    %33 = vector.shape_cast %32 : vector<8xf32> to vector<8x1xf32>
    %34 = tpu.reciprocal %33 {approx = true} : vector<8x1xf32> -> vector<8x1xf32>
    %35 = vector.broadcast %34 : vector<8x1xf32> to vector<8x128xf32>
    %36 = arith.mulf %31, %35 : vector<8x128xf32>
    %c0_19 = arith.constant 0 : index
    %c0_20 = arith.constant 0 : index
    %37 = vector.load %arg8[%c0_19, %c0_20] : memref<8x128xf32, #tpu.memory_space<vmem>>, vector<8x128xf32>
    tpu.vector_store %arg8[%c0_19, %c0_20], %36 {strides = array<i32>} : memref<8x128xf32, #tpu.memory_space<vmem>>, vector<8x128xf32>,
    return
  }
  func.func @transform_0(%arg0: i32) -> (i32, i32) {
    %c0_i32 = arith.constant 0 : i32
    %c0_i32_0 = arith.constant 0 : i32
    return %arg0, %c0_i32 : i32, i32
  }
  func.func @transform_1(%arg0: i32) -> (i32, i32) {
    %c0_i32 = arith.constant 0 : i32
    %c0_i32_0 = arith.constant 0 : i32
    %c0_i32_1 = arith.constant 0 : i32
    return %c0_i32, %c0_i32_0 : i32, i32
  }
  func.func @transform_2(%arg0: i32) -> (i32, i32) {
    %c0_i32 = arith.constant 0 : i32
    %c0_i32_0 = arith.constant 0 : i32
    %c0_i32_1 = arith.constant 0 : i32
    return %c0_i32, %c0_i32_0 : i32, i32
  }
  func.func @transform_3(%arg0: i32) -> (i32, i32) {
    %c0_i32 = arith.constant 0 : i32
    %c0_i32_0 = arith.constant 0 : i32
    %c0_i32_1 = arith.constant 0 : i32
    return %c0_i32, %c0_i32_0 : i32, i32
  }
  func.func @transform_4(%arg0: i32) -> (i32, i32) {
    %c0_i32 = arith.constant 0 : i32
    %c0_i32_0 = arith.constant 0 : i32
    %c0_i32_1 = arith.constant 0 : i32
    return %c0_i32, %c0_i32_0 : i32, i32
  }
  func.func @transform_5(%arg0: i32) -> (i32, i32) {
    %c0_i32 = arith.constant 0 : i32
    %c0_i32_0 = arith.constant 0 : i32
    %c0_i32_1 = arith.constant 0 : i32
    return %c0_i32, %c0_i32_0 : i32, i32
  }
  func.func @transform_6(%arg0: i32) -> (i32, i32) {
    %c0_i32 = arith.constant 0 : i32
    %c0_i32_0 = arith.constant 0 : i32
    %c0_i32_1 = arith.constant 0 : i32
    return %c0_i32, %c0_i32_0 : i32, i32
  }
  func.func @transform_7(%arg0: i32) -> (i32, i32) {
    %c0_i32 = arith.constant 0 : i32
    %c0_i32_0 = arith.constant 0 : i32
    return %arg0, %c0_i32 : i32, i32
  }
}

</mosaic_0001>

<llo_original>
// kernel: actor_forward.4
$region0: #{actor_forward.4}
  #allocation0 [shape = 'u32[]', space=smem, size = 0x4, offset = 0x4, fixed_abs, tag = 'smem constant byte address 0x4 - core index']
  #allocation1 [shape = 'u32[144,128]{1,0:T(1,128)}', space=vmem, size = 0x12000, scoped, tag = 'internal scratch']
  #allocation2 [shape = 'f32[128,128]{1,0:T(8,128)}', space=vmem, size = 0x10000, scoped, tag = 'scratch operand']
  %s0 = inlined_call_operand.vmem [shape: bf16[128,256], index: 0, kind: input, shape index: {}]
  %s1 = inlined_call_operand.vmem [shape: bf16[256,128], index: 1, kind: input, shape index: {}]
  %s2 = inlined_call_operand.vmem [shape: f32[1,128], index: 2, kind: input, shape index: {}]
  %s3 = inlined_call_operand.vmem [shape: f32[128,128], index: 3, kind: output, shape index: {}]
  %s4 = sld [smem:[#allocation0]]
  $region30: #{actor_forward.4} parent=0
    _
  %s6 = ssub.s32 1, %s4
  %s7 = scalar_select 0, %s6, %s4
  // Predicated region
  $region2: #{actor_forward.4} parent=0 // pred_check
    _
  $region3: #{actor_forward.4} parent=0 // pred_check_branch
    %9 = sbr.rel (0) target = $region5
  $region4: #{actor_forward.4} parent=0 // pred_region
    _
  $region5: #{actor_forward.4} parent=0 // pred_fallthru
    _
  // Predicated region
  $region6: #{actor_forward.4} parent=0 // pred_check
    _
  $region7: #{actor_forward.4} parent=0 // pred_check_branch
    %11 = sbr.rel (0) target = $region9
  $region8: #{actor_forward.4} parent=0 // pred_region
    _
  $region9: #{actor_forward.4} parent=0 // pred_fallthru
    _
  // Predicated region
  $region10: #{actor_forward.4} parent=0 // pred_check
    _
  $region11: #{actor_forward.4} parent=0 // pred_check_branch
    %13 = sbr.rel (0) target = $region13
  $region12: #{actor_forward.4} parent=0 // pred_region
    _
  $region13: #{actor_forward.4} parent=0 // pred_fallthru
    _
  %p15 = scmp.eq.s32.totalorder 0, 0
  // Predicated region
  $region14: #{actor_forward.4} parent=0 // pred_check
    %p16 = pneg %p15
  $region15: #{actor_forward.4} parent=0 // pred_check_branch
    %18 = sbr.rel (%p16) target = $region17
  $region16: #{actor_forward.4} parent=0 // pred_region
    %19 = vst [vmem:[#allocation2] sm:$0xff] 0.0
    %20 = vst [vmem:[#allocation2 + $0x8] sm:$0xff] 0.0
    %21 = vst [vmem:[#allocation2 + $0x10] sm:$0xff] 0.0
    %22 = vst [vmem:[#allocation2 + $0x18] sm:$0xff] 0.0
    %23 = vst [vmem:[#allocation2 + $0x20] sm:$0xff] 0.0
    %24 = vst [vmem:[#allocation2 + $0x28] sm:$0xff] 0.0
    %25 = vst [vmem:[#allocation2 + $0x30] sm:$0xff] 0.0
    %26 = vst [vmem:[#allocation2 + $0x38] sm:$0xff] 0.0
    %27 = vst [vmem:[#allocation2 + $0x40] sm:$0xff] 0.0
    %28 = vst [vmem:[#allocation2 + $0x48] sm:$0xff] 0.0
    %29 = vst [vmem:[#allocation2 + $0x50] sm:$0xff] 0.0
    %30 = vst [vmem:[#allocation2 + $0x58] sm:$0xff] 0.0
    %31 = vst [vmem:[#allocation2 + $0x60] sm:$0xff] 0.0
    %32 = vst [vmem:[#allocation2 + $0x68] sm:$0xff] 0.0
    %33 = vst [vmem:[#allocation2 + $0x70] sm:$0xff] 0.0
    %34 = vst [vmem:[#allocation2 + $0x78] sm:$0xff] 0.0
  $region17: #{actor_forward.4} parent=0 // pred_fallthru
    _
  %v35 = vld [vmem:[#allocation2] sm:$0xff]
  %v36 = vld [vmem:[#allocation2 + $0x8] sm:$0xff]
  %v37 = vld [vmem:[#allocation2 + $0x10] sm:$0xff]
  %v38 = vld [vmem:[#allocation2 + $0x18] sm:$0xff]
  %v39 = vld [vmem:[#allocation2 + $0x20] sm:$0xff]
  %v40 = vld [vmem:[#allocation2 + $0x28] sm:$0xff]
  %v41 = vld [vmem:[#allocation2 + $0x30] sm:$0xff]
  %v42 = vld [vmem:[#allocation2 + $0x38] sm:$0xff]
  %v43 = vld [vmem:[#allocation2 + $0x40] sm:$0xff]
  %v44 = vld [vmem:[#allocation2 + $0x48] sm:$0xff]
  %v45 = vld [vmem:[#allocation2 + $0x50] sm:$0xff]
  %v46 = vld [vmem:[#allocation2 + $0x58] sm:$0xff]
  %v47 = vld [vmem:[#allocation2 + $0x60] sm:$0xff]
  %v48 = vld [vmem:[#allocation2 + $0x68] sm:$0xff]
  %v49 = vld [vmem:[#allocation2 + $0x70] sm:$0xff]
  %v50 = vld [vmem:[#allocation2 + $0x78] sm:$0xff]
  %v51 = vld [vmem:[%s0] sm:$0xff]
  %v52 = vld [vmem:[%s0 + $0x8] sm:$0xff]
  %v53 = vld [vmem:[%s0 + $0x10] sm:$0xff]
  %v54 = vld [vmem:[%s0 + $0x18] sm:$0xff]
  %v55 = vld [vmem:[%s0 + $0x20] sm:$0xff]
  %v56 = vld [vmem:[%s0 + $0x28] sm:$0xff]
  %v57 = vld [vmem:[%s0 + $0x30] sm:$0xff]
  %v58 = vld [vmem:[%s0 + $0x38] sm:$0xff]
  %v59 = vld [vmem:[%s0 + $0x40] sm:$0xff]
  %v60 = vld [vmem:[%s0 + $0x48] sm:$0xff]
  %v61 = vld [vmem:[%s0 + $0x50] sm:$0xff]
  %v62 = vld [vmem:[%s0 + $0x58] sm:$0xff]
  %v63 = vld [vmem:[%s0 + $0x60] sm:$0xff]
  %v64 = vld [vmem:[%s0 + $0x68] sm:$0xff]
  %v65 = vld [vmem:[%s0 + $0x70] sm:$0xff]
  %v66 = vld [vmem:[%s0 + $0x78] sm:$0xff]
  %v67 = vld [vmem:[%s1] sm:$0xf]
  %v68 = vld [vmem:[%s1 + $0x4] sm:$0xf]
  %v69 = vld [vmem:[%s1 + $0x8] sm:$0xf]
  %v70 = vld [vmem:[%s1 + $0xc] sm:$0xf]
  %v71 = vld [vmem:[%s1 + $0x10] sm:$0xf]
  %v72 = vld [vmem:[%s1 + $0x14] sm:$0xf]
  %v73 = vld [vmem:[%s1 + $0x18] sm:$0xf]
  %v74 = vld [vmem:[%s1 + $0x1c] sm:$0xf]
  %v75 = vld [vmem:[%s1 + $0x20] sm:$0xf]
  %v76 = vld [vmem:[%s1 + $0x24] sm:$0xf]
  %v77 = vld [vmem:[%s1 + $0x28] sm:$0xf]
  %v78 = vld [vmem:[%s1 + $0x2c] sm:$0xf]
  %v79 = vld [vmem:[%s1 + $0x30] sm:$0xf]
  %v80 = vld [vmem:[%s1 + $0x34] sm:$0xf]
  %v81 = vld [vmem:[%s1 + $0x38] sm:$0xf]
  %v82 = vld [vmem:[%s1 + $0x3c] sm:$0xf]
  %v83 = vld [vmem:[%s1 + $0x40] sm:$0xf]
  %v84 = vld [vmem:[%s1 + $0x44] sm:$0xf]
  %v85 = vld [vmem:[%s1 + $0x48] sm:$0xf]
  %v86 = vld [vmem:[%s1 + $0x4c] sm:$0xf]
  %v87 = vld [vmem:[%s1 + $0x50] sm:$0xf]
  %v88 = vld [vmem:[%s1 + $0x54] sm:$0xf]
  %v89 = vld [vmem:[%s1 + $0x58] sm:$0xf]
  %v90 = vld [vmem:[%s1 + $0x5c] sm:$0xf]
  %v91 = vld [vmem:[%s1 + $0x60] sm:$0xf]
  %v92 = vld [vmem:[%s1 + $0x64] sm:$0xf]
  %v93 = vld [vmem:[%s1 + $0x68] sm:$0xf]
  %v94 = vld [vmem:[%s1 + $0x6c] sm:$0xf]
  %v95 = vld [vmem:[%s1 + $0x70] sm:$0xf]
  %v96 = vld [vmem:[%s1 + $0x74] sm:$0xf]
  %v97 = vld [vmem:[%s1 + $0x78] sm:$0xf]
  %v98 = vld [vmem:[%s1 + $0x7c] sm:$0xf]
  %v115 = vunpack.c.l.b16 %v51
  %v116 = vunpack.c.h.b16 %v51
  %v117 = vunpack.c.l.b16 %v52
  %v118 = vunpack.c.h.b16 %v52
  %v119 = vunpack.c.l.b16 %v53
  %v120 = vunpack.c.h.b16 %v53
  %v121 = vunpack.c.l.b16 %v54
  %v122 = vunpack.c.h.b16 %v54
  %v123 = vunpack.c.l.b16 %v55
  %v124 = vunpack.c.h.b16 %v55
  %v125 = vunpack.c.l.b16 %v56
  %v126 = vunpack.c.h.b16 %v56
  %v127 = vunpack.c.l.b16 %v57
  %v128 = vunpack.c.h.b16 %v57
  %v129 = vunpack.c.l.b16 %v58
  %v130 = vunpack.c.h.b16 %v58
  %v131 = vunpack.c.l.b16 %v59
  %v132 = vunpack.c.h.b16 %v59
  %v133 = vunpack.c.l.b16 %v60
  %v134 = vunpack.c.h.b16 %v60
  %v135 = vunpack.c.l.b16 %v61
  %v136 = vunpack.c.h.b16 %v61
  %v137 = vunpack.c.l.b16 %v62
  %v138 = vunpack.c.h.b16 %v62
  %v139 = vunpack.c.l.b16 %v63
  %v140 = vunpack.c.h.b16 %v63
  %v141 = vunpack.c.l.b16 %v64
  %v142 = vunpack.c.h.b16 %v64
  %v143 = vunpack.c.l.b16 %v65
  %v144 = vunpack.c.h.b16 %v65
  %v145 = vunpack.c.l.b16 %v66
  %v146 = vunpack.c.h.b16 %v66
  %v147 = vpack.c.b16 %v117, %v115
  %v148 = vpack.c.b16 %v118, %v116
  %v149 = vpack.c.b16 %v121, %v119
  %v150 = vpack.c.b16 %v122, %v120
  %v151 = vpack.c.b16 %v125, %v123
  %v152 = vpack.c.b16 %v126, %v124
  %v153 = vpack.c.b16 %v129, %v127
  %v154 = vpack.c.b16 %v130, %v128
  %v155 = vpack.c.b16 %v133, %v131
  %v156 = vpack.c.b16 %v134, %v132
  %v157 = vpack.c.b16 %v137, %v135
  %v158 = vpack.c.b16 %v138, %v136
  %v159 = vpack.c.b16 %v141, %v139
  %v160 = vpack.c.b16 %v142, %v140
  %v161 = vpack.c.b16 %v145, %v143
  %v162 = vpack.c.b16 %v146, %v144
  %v211 = vunpack.c.l.b16 %v67
  %v212 = vunpack.c.l.b16 %v68
  %v213 = vunpack.c.l.b16 %v69
  %v214 = vunpack.c.l.b16 %v70
  %v215 = vunpack.c.l.b16 %v71
  %v216 = vunpack.c.l.b16 %v72
  %v217 = vunpack.c.l.b16 %v73
  %v218 = vunpack.c.l.b16 %v74
  %v219 = vunpack.c.l.b16 %v75
  %v220 = vunpack.c.l.b16 %v76
  %v221 = vunpack.c.l.b16 %v77
  %v222 = vunpack.c.l.b16 %v78
  %v223 = vunpack.c.l.b16 %v79
  %v224 = vunpack.c.l.b16 %v80
  %v225 = vunpack.c.l.b16 %v81
  %v226 = vunpack.c.l.b16 %v82
  %v227 = vunpack.c.l.b16 %v83
  %v228 = vunpack.c.l.b16 %v84
  %v229 = vunpack.c.l.b16 %v85
  %v230 = vunpack.c.l.b16 %v86
  %v231 = vunpack.c.l.b16 %v87
  %v232 = vunpack.c.l.b16 %v88
  %v233 = vunpack.c.l.b16 %v89
  %v234 = vunpack.c.l.b16 %v90
  %v235 = vunpack.c.l.b16 %v91
  %v236 = vunpack.c.l.b16 %v92
  %v237 = vunpack.c.l.b16 %v93
  %v238 = vunpack.c.l.b16 %v94
  %v239 = vunpack.c.l.b16 %v95
  %v240 = vunpack.c.l.b16 %v96
  %v241 = vunpack.c.l.b16 %v97
  %v242 = vunpack.c.l.b16 %v98
  %v243 = vpack.c.b16 %v212, %v211
  %v244 = vpack.c.b16 %v214, %v213
  %v245 = vpack.c.b16 %v216, %v215
  %v246 = vpack.c.b16 %v218, %v217
  %v247 = vpack.c.b16 %v220, %v219
  %v248 = vpack.c.b16 %v222, %v221
  %v249 = vpack.c.b16 %v224, %v223
  %v250 = vpack.c.b16 %v226, %v225
  %v251 = vpack.c.b16 %v228, %v227
  %v252 = vpack.c.b16 %v230, %v229
  %v253 = vpack.c.b16 %v232, %v231
  %v254 = vpack.c.b16 %v234, %v233
  %v255 = vpack.c.b16 %v236, %v235
  %v256 = vpack.c.b16 %v238, %v237
  %v257 = vpack.c.b16 %v240, %v239
  %v258 = vpack.c.b16 %v242, %v241
  %275 = vmatprep.subr.bf16.mxu0 0
  %276 = vmatpush1.bf16.msra.mxu0 %v250
  %277 = vmatprep.subr.bf16.mxu0 0
  %278 = vmatpush1.bf16.msra.mxu0 %v249
  %279 = vmatprep.subr.bf16.mxu0 0
  %280 = vmatpush1.bf16.msra.mxu0 %v248
  %281 = vmatprep.subr.bf16.mxu0 0
  %282 = vmatpush1.bf16.msra.mxu0 %v247
  %283 = vmatprep.subr.bf16.mxu0 0
  %284 = vmatpush1.bf16.msra.mxu0 %v246
  %285 = vmatprep.subr.bf16.mxu0 0
  %286 = vmatpush1.bf16.msra.mxu0 %v245
  %287 = vmatprep.subr.bf16.mxu0 0
  %288 = vmatpush1.bf16.msra.mxu0 %v244
  %289 = vmatprep.subr.bf16.mxu0 0
  %290 = vmatpush1.bf16.msra.mxu0 %v243
  %291 = vmatprep.subr.bf16.mxu0 0
  %292 = vmatpush2.bf16.msra.mxu0 %v258
  %293 = vmatprep.subr.bf16.mxu0 0
  %294 = vmatpush2.bf16.msra.mxu0 %v257
  %295 = vmatprep.subr.bf16.mxu0 0
  %296 = vmatpush2.bf16.msra.mxu0 %v256
  %297 = vmatprep.subr.bf16.mxu0 0
  %298 = vmatpush2.bf16.msra.mxu0 %v255
  %299 = vmatprep.subr.bf16.mxu0 0
  %300 = vmatpush2.bf16.msra.mxu0 %v254
  %301 = vmatprep.subr.bf16.mxu0 0
  %302 = vmatpush2.bf16.msra.mxu0 %v253
  %303 = vmatprep.subr.bf16.mxu0 0
  %304 = vmatpush2.bf16.msra.mxu0 %v252
  %305 = vmatprep.subr.bf16.mxu0 0
  %306 = vmatpush2.bf16.msra.mxu0 %v251
  %307 = vmatprep.mubr.bf16.mxu0 %v148
  %308 = vmatmul.mubr.bf16.gmra.mxu0 %v147
  %v309 = vpop.f32.mrf.mxu0
  %v310 = vadd.f32 0.0, %v309
  %v311 = vpop.f32.mrf.mxu0
  %v312 = vpop.f32.mrf.mxu0
  %v313 = vadd.f32 0.0, %v312
  %v314 = vpop.f32.mrf.mxu0
  %315 = vmatprep.mubr.bf16.mxu0 %v150
  %316 = vmatmul.mubr.bf16.gmra.mxu0 %v149
  %v317 = vpop.f32.mrf.mxu0
  %v318 = vadd.f32 0.0, %v317
  %v319 = vpop.f32.mrf.mxu0
  %v320 = vpop.f32.mrf.mxu0
  %v321 = vadd.f32 0.0, %v320
  %v322 = vpop.f32.mrf.mxu0
  %323 = vmatprep.mubr.bf16.mxu0 %v152
  %324 = vmatmul.mubr.bf16.gmra.mxu0 %v151
  %v325 = vpop.f32.mrf.mxu0
  %v326 = vadd.f32 0.0, %v325
  %v327 = vpop.f32.mrf.mxu0
  %v328 = vpop.f32.mrf.mxu0
  %v329 = vadd.f32 0.0, %v328
  %v330 = vpop.f32.mrf.mxu0
  %331 = vmatprep.mubr.bf16.mxu0 %v154
  %332 = vmatmul.mubr.bf16.gmra.mxu0 %v153
  %v333 = vpop.f32.mrf.mxu0
  %v334 = vadd.f32 0.0, %v333
  %v335 = vpop.f32.mrf.mxu0
  %v336 = vpop.f32.mrf.mxu0
  %v337 = vadd.f32 0.0, %v336
  %v338 = vpop.f32.mrf.mxu0
  %339 = vmatprep.mubr.bf16.mxu0 %v156
  %340 = vmatmul.mubr.bf16.gmra.mxu0 %v155
  %v341 = vpop.f32.mrf.mxu0
  %v342 = vadd.f32 0.0, %v341
  %v343 = vpop.f32.mrf.mxu0
  %v344 = vpop.f32.mrf.mxu0
  %v345 = vadd.f32 0.0, %v344
  %v346 = vpop.f32.mrf.mxu0
  %347 = vmatprep.mubr.bf16.mxu0 %v158
  %348 = vmatmul.mubr.bf16.gmra.mxu0 %v157
  %v349 = vpop.f32.mrf.mxu0
  %v350 = vadd.f32 0.0, %v349
  %v351 = vpop.f32.mrf.mxu0
  %v352 = vpop.f32.mrf.mxu0
  %v353 = vadd.f32 0.0, %v352
  %v354 = vpop.f32.mrf.mxu0
  %355 = vmatprep.mubr.bf16.mxu0 %v160
  %356 = vmatmul.mubr.bf16.gmra.mxu0 %v159
  %v357 = vpop.f32.mrf.mxu0
  %v358 = vadd.f32 0.0, %v357
  %v359 = vpop.f32.mrf.mxu0
  %v360 = vpop.f32.mrf.mxu0
  %v361 = vadd.f32 0.0, %v360
  %v362 = vpop.f32.mrf.mxu0
  %363 = vmatprep.mubr.bf16.mxu0 %v162
  %364 = vmatmul.mubr.bf16.gmra.mxu0 %v161
  %v365 = vpop.f32.mrf.mxu0
  %v366 = vadd.f32 0.0, %v365
  %v367 = vpop.f32.mrf.mxu0
  %v368 = vpop.f32.mrf.mxu0
  %v369 = vadd.f32 0.0, %v368
  %v370 = vpop.f32.mrf.mxu0
  %371 = vdwg.mxu0
  %v372 = vadd.f32 %v35, %v310
  %v373 = vadd.f32 %v36, %v313
  %v374 = vadd.f32 %v37, %v318
  %v375 = vadd.f32 %v38, %v321
  %v376 = vadd.f32 %v39, %v326
  %v377 = vadd.f32 %v40, %v329
  %v378 = vadd.f32 %v41, %v334
  %v379 = vadd.f32 %v42, %v337
  %v380 = vadd.f32 %v43, %v342
  %v381 = vadd.f32 %v44, %v345
  %v382 = vadd.f32 %v45, %v350
  %v383 = vadd.f32 %v46, %v353
  %v384 = vadd.f32 %v47, %v358
  %v385 = vadd.f32 %v48, %v361
  %v386 = vadd.f32 %v49, %v366
  %v387 = vadd.f32 %v50, %v369
  %388 = vst [vmem:[#allocation2] sm:$0xff] %v372
  %389 = vst [vmem:[#allocation2 + $0x8] sm:$0xff] %v373
  %390 = vst [vmem:[#allocation2 + $0x10] sm:$0xff] %v374
  %391 = vst [vmem:[#allocation2 + $0x18] sm:$0xff] %v375
  %392 = vst [vmem:[#allocation2 + $0x20] sm:$0xff] %v376
  %393 = vst [vmem:[#allocation2 + $0x28] sm:$0xff] %v377
  %394 = vst [vmem:[#allocation2 + $0x30] sm:$0xff] %v378
  %395 = vst [vmem:[#allocation2 + $0x38] sm:$0xff] %v379
  %396 = vst [vmem:[#allocation2 + $0x40] sm:$0xff] %v380
  %397 = vst [vmem:[#allocation2 + $0x48] sm:$0xff] %v381
  %398 = vst [vmem:[#allocation2 + $0x50] sm:$0xff] %v382
  %399 = vst [vmem:[#allocation2 + $0x58] sm:$0xff] %v383
  %400 = vst [vmem:[#allocation2 + $0x60] sm:$0xff] %v384
  %401 = vst [vmem:[#allocation2 + $0x68] sm:$0xff] %v385
  %402 = vst [vmem:[#allocation2 + $0x70] sm:$0xff] %v386
  %403 = vst [vmem:[#allocation2 + $0x78] sm:$0xff] %v387
  // Predicated region
  $region18: #{actor_forward.4} parent=0 // pred_check
    %p404 = pneg %p15
  $region19: #{actor_forward.4} parent=0 // pred_check_branch
    %406 = sbr.rel (%p404) target = $region21
  $region20: #{actor_forward.4} parent=0 // pred_region
    %v407 = vld [vmem:[#allocation2] sm:$0xff]
    %v408 = vld [vmem:[#allocation2 + $0x8] sm:$0xff]
    %v409 = vld [vmem:[#allocation2 + $0x10] sm:$0xff]
    %v410 = vld [vmem:[#allocation2 + $0x18] sm:$0xff]
    %v411 = vld [vmem:[#allocation2 + $0x20] sm:$0xff]
    %v412 = vld [vmem:[#allocation2 + $0x28] sm:$0xff]
    %v413 = vld [vmem:[#allocation2 + $0x30] sm:$0xff]
    %v414 = vld [vmem:[#allocation2 + $0x38] sm:$0xff]
    %v415 = vld [vmem:[#allocation2 + $0x40] sm:$0xff]
    %v416 = vld [vmem:[#allocation2 + $0x48] sm:$0xff]
    %v417 = vld [vmem:[#allocation2 + $0x50] sm:$0xff]
    %v418 = vld [vmem:[#allocation2 + $0x58] sm:$0xff]
    %v419 = vld [vmem:[#allocation2 + $0x60] sm:$0xff]
    %v420 = vld [vmem:[#allocation2 + $0x68] sm:$0xff]
    %v421 = vld [vmem:[#allocation2 + $0x70] sm:$0xff]
    %v422 = vld [vmem:[#allocation2 + $0x78] sm:$0xff]
    %v423 = vmul.f32 %v407, 0.003921569
    %v424 = vmul.f32 %v408, 0.003921569
    %v425 = vmul.f32 %v409, 0.003921569
    %v426 = vmul.f32 %v410, 0.003921569
    %v427 = vmul.f32 %v411, 0.003921569
    %v428 = vmul.f32 %v412, 0.003921569
    %v429 = vmul.f32 %v413, 0.003921569
    %v430 = vmul.f32 %v414, 0.003921569
    %v431 = vmul.f32 %v415, 0.003921569
    %v432 = vmul.f32 %v416, 0.003921569
    %v433 = vmul.f32 %v417, 0.003921569
    %v434 = vmul.f32 %v418, 0.003921569
    %v435 = vmul.f32 %v419, 0.003921569
    %v436 = vmul.f32 %v420, 0.003921569
    %v437 = vmul.f32 %v421, 0.003921569
    %v438 = vmul.f32 %v422, 0.003921569
    %v439 = vld [vmem:[%s2] sm:$0x1]
    %v441 = vlaneseq
    %v442 = vshrl.u32 %v441, 7
    %v443 = vsub.s32 0, %v442
    %v444 = vrot.slane %v439, %v443
    %v446 = vadd.f32 %v423, %v444
    %v447 = vadd.f32 %v424, %v444
    %v448 = vadd.f32 %v425, %v444
    %v449 = vadd.f32 %v426, %v444
    %v450 = vadd.f32 %v427, %v444
    %v451 = vadd.f32 %v428, %v444
    %v452 = vadd.f32 %v429, %v444
    %v453 = vadd.f32 %v430, %v444
    %v454 = vadd.f32 %v431, %v444
    %v455 = vadd.f32 %v432, %v444
    %v456 = vadd.f32 %v433, %v444
    %v457 = vadd.f32 %v434, %v444
    %v458 = vadd.f32 %v435, %v444
    %v459 = vadd.f32 %v436, %v444
    %v460 = vadd.f32 %v437, %v444
    %v461 = vadd.f32 %v438, %v444
    %v462 = vmax.f32 %v446, 0.0
    %v463 = vmax.f32 %v447, 0.0
    %v464 = vmax.f32 %v448, 0.0
    %v465 = vmax.f32 %v449, 0.0
    %v466 = vmax.f32 %v450, 0.0
    %v467 = vmax.f32 %v451, 0.0
    %v468 = vmax.f32 %v452, 0.0
    %v469 = vmax.f32 %v453, 0.0
    %v470 = vmax.f32 %v454, 0.0
    %v471 = vmax.f32 %v455, 0.0
    %v472 = vmax.f32 %v456, 0.0
    %v473 = vmax.f32 %v457, 0.0
    %v474 = vmax.f32 %v458, 0.0
    %v475 = vmax.f32 %v459, 0.0
    %v476 = vmax.f32 %v460, 0.0
    %v477 = vmax.f32 %v461, 0.0
    %478 = vst [vmem:[%s3] sm:$0xff] %v462
    %479 = vst [vmem:[%s3 + $0x8] sm:$0xff] %v463
    %480 = vst [vmem:[%s3 + $0x10] sm:$0xff] %v464
    %481 = vst [vmem:[%s3 + $0x18] sm:$0xff] %v465
    %482 = vst [vmem:[%s3 + $0x20] sm:$0xff] %v466
    %483 = vst [vmem:[%s3 + $0x28] sm:$0xff] %v467
    %484 = vst [vmem:[%s3 + $0x30] sm:$0xff] %v468
    %485 = vst [vmem:[%s3 + $0x38] sm:$0xff] %v469
    %486 = vst [vmem:[%s3 + $0x40] sm:$0xff] %v470
    %487 = vst [vmem:[%s3 + $0x48] sm:$0xff] %v471
    %488 = vst [vmem:[%s3 + $0x50] sm:$0xff] %v472
    %489 = vst [vmem:[%s3 + $0x58] sm:$0xff] %v473
    %490 = vst [vmem:[%s3 + $0x60] sm:$0xff] %v474
    %491 = vst [vmem:[%s3 + $0x68] sm:$0xff] %v475
    %492 = vst [vmem:[%s3 + $0x70] sm:$0xff] %v476
    %493 = vst [vmem:[%s3 + $0x78] sm:$0xff] %v477
  $region21: #{actor_forward.4} parent=0 // pred_fallthru
    _
  // Predicated region
  $region22: #{actor_forward.4} parent=0 // pred_check
    _
  $region23: #{actor_forward.4} parent=0 // pred_check_branch
    %495 = sbr.rel (0) target = $region25
  $region24: #{actor_forward.4} parent=0 // pred_region
    _
  $region25: #{actor_forward.4} parent=0 // pred_fallthru
    _
  // Predicated region
  $region26: #{actor_forward.4} parent=0 // pred_check
    _
  $region27: #{actor_forward.4} parent=0 // pred_check_branch
    %497 = sbr.rel (0) target = $region29
  $region28: #{actor_forward.4} parent=0 // pred_region
    _
  $region29: #{actor_forward.4} parent=0 // pred_fallthru
    _

// kernel: actor_forward.5
$region0: #{actor_forward.5}
  #allocation0 [shape = 'u32[]', space=smem, size = 0x4, offset = 0x4, fixed_abs, tag = 'smem constant byte address 0x4 - core index']
  #allocation1 [shape = 'u32[144,128]{1,0:T(1,128)}', space=vmem, size = 0x12000, scoped, tag = 'internal scratch']
  #allocation2 [shape = 'f32[32,128]{1,0:T(8,128)}', space=vmem, size = 0x4000, scoped, tag = 'scratch operand']
  %s0 = inlined_call_operand.vmem [shape: bf16[32,512], index: 0, kind: input, shape index: {}]
  %s1 = inlined_call_operand.vmem [shape: bf16[512,128], index: 1, kind: input, shape index: {}]
  %s2 = inlined_call_operand.vmem [shape: f32[1,128], index: 2, kind: input, shape index: {}]
  %s3 = inlined_call_operand.vmem [shape: f32[32,128], index: 3, kind: output, shape index: {}]
  %s4 = sld [smem:[#allocation0]]
  $region30: #{actor_forward.5} parent=0
    _
  %s6 = ssub.s32 1, %s4
  %s7 = scalar_select 0, %s6, %s4
  // Predicated region
  $region2: #{actor_forward.5} parent=0 // pred_check
    _
  $region3: #{actor_forward.5} parent=0 // pred_check_branch
    %9 = sbr.rel (0) target = $region5
  $region4: #{actor_forward.5} parent=0 // pred_region
    _
  $region5: #{actor_forward.5} parent=0 // pred_fallthru
    _
  // Predicated region
  $region6: #{actor_forward.5} parent=0 // pred_check
    _
  $region7: #{actor_forward.5} parent=0 // pred_check_branch
    %11 = sbr.rel (0) target = $region9
  $region8: #{actor_forward.5} parent=0 // pred_region
    _
  $region9: #{actor_forward.5} parent=0 // pred_fallthru
    _
  // Predicated region
  $region10: #{actor_forward.5} parent=0 // pred_check
    _
  $region11: #{actor_forward.5} parent=0 // pred_check_branch
    %13 = sbr.rel (0) target = $region13
  $region12: #{actor_forward.5} parent=0 // pred_region
    _
  $region13: #{actor_forward.5} parent=0 // pred_fallthru
    _
  %p15 = scmp.eq.s32.totalorder 0, 0
  // Predicated region
  $region14: #{actor_forward.5} parent=0 // pred_check
    %p16 = pneg %p15
  $region15: #{actor_forward.5} parent=0 // pred_check_branch
    %18 = sbr.rel (%p16) target = $region17
  $region16: #{actor_forward.5} parent=0 // pred_region
    %19 = vst [vmem:[#allocation2] sm:$0xff] 0.0
    %20 = vst [vmem:[#allocation2 + $0x8] sm:$0xff] 0.0
    %21 = vst [vmem:[#allocation2 + $0x10] sm:$0xff] 0.0
    %22 = vst [vmem:[#allocation2 + $0x18] sm:$0xff] 0.0
  $region17: #{actor_forward.5} parent=0 // pred_fallthru
    _
  %v23 = vld [vmem:[#allocation2] sm:$0xff]
  %v24 = vld [vmem:[#allocation2 + $0x8] sm:$0xff]
  %v25 = vld [vmem:[#allocation2 + $0x10] sm:$0xff]
  %v26 = vld [vmem:[#allocation2 + $0x18] sm:$0xff]
  %v27 = vld [vmem:[%s0] sm:$0xff]
  %v28 = vld [vmem:[%s0 + $0x8] sm:$0xff]
  %v29 = vld [vmem:[%s0 + $0x10] sm:$0xff]
  %v30 = vld [vmem:[%s0 + $0x18] sm:$0xff]
  %v31 = vld [vmem:[%s0 + $0x20] sm:$0xff]
  %v32 = vld [vmem:[%s0 + $0x28] sm:$0xff]
  %v33 = vld [vmem:[%s0 + $0x30] sm:$0xff]
  %v34 = vld [vmem:[%s0 + $0x38] sm:$0xff]
  %v35 = vld [vmem:[%s1] sm:$0xf]
  %v36 = vld [vmem:[%s1 + $0x4] sm:$0xf]
  %v37 = vld [vmem:[%s1 + $0x8] sm:$0xf]
  %v38 = vld [vmem:[%s1 + $0xc] sm:$0xf]
  %v39 = vld [vmem:[%s1 + $0x10] sm:$0xf]
  %v40 = vld [vmem:[%s1 + $0x14] sm:$0xf]
  %v41 = vld [vmem:[%s1 + $0x18] sm:$0xf]
  %v42 = vld [vmem:[%s1 + $0x1c] sm:$0xf]
  %v43 = vld [vmem:[%s1 + $0x20] sm:$0xf]
  %v44 = vld [vmem:[%s1 + $0x24] sm:$0xf]
  %v45 = vld [vmem:[%s1 + $0x28] sm:$0xf]
  %v46 = vld [vmem:[%s1 + $0x2c] sm:$0xf]
  %v47 = vld [vmem:[%s1 + $0x30] sm:$0xf]
  %v48 = vld [vmem:[%s1 + $0x34] sm:$0xf]
  %v49 = vld [vmem:[%s1 + $0x38] sm:$0xf]
  %v50 = vld [vmem:[%s1 + $0x3c] sm:$0xf]
  %v51 = vld [vmem:[%s1 + $0x40] sm:$0xf]
  %v52 = vld [vmem:[%s1 + $0x44] sm:$0xf]
  %v53 = vld [vmem:[%s1 + $0x48] sm:$0xf]
  %v54 = vld [vmem:[%s1 + $0x4c] sm:$0xf]
  %v55 = vld [vmem:[%s1 + $0x50] sm:$0xf]
  %v56 = vld [vmem:[%s1 + $0x54] sm:$0xf]
  %v57 = vld [vmem:[%s1 + $0x58] sm:$0xf]
  %v58 = vld [vmem:[%s1 + $0x5c] sm:$0xf]
  %v59 = vld [vmem:[%s1 + $0x60] sm:$0xf]
  %v60 = vld [vmem:[%s1 + $0x64] sm:$0xf]
  %v61 = vld [vmem:[%s1 + $0x68] sm:$0xf]
  %v62 = vld [vmem:[%s1 + $0x6c] sm:$0xf]
  %v63 = vld [vmem:[%s1 + $0x70] sm:$0xf]
  %v64 = vld [vmem:[%s1 + $0x74] sm:$0xf]
  %v65 = vld [vmem:[%s1 + $0x78] sm:$0xf]
  %v66 = vld [vmem:[%s1 + $0x7c] sm:$0xf]
  %v67 = vld [vmem:[%s1 + $0x80] sm:$0xf]
  %v68 = vld [vmem:[%s1 + $0x84] sm:$0xf]
  %v69 = vld [vmem:[%s1 + $0x88] sm:$0xf]
  %v70 = vld [vmem:[%s1 + $0x8c] sm:$0xf]
  %v71 = vld [vmem:[%s1 + $0x90] sm:$0xf]
  %v72 = vld [vmem:[%s1 + $0x94] sm:$0xf]
  %v73 = vld [vmem:[%s1 + $0x98] sm:$0xf]
  %v74 = vld [vmem:[%s1 + $0x9c] sm:$0xf]
  %v75 = vld [vmem:[%s1 + $0xa0] sm:$0xf]
  %v76 = vld [vmem:[%s1 + $0xa4] sm:$0xf]
  %v77 = vld [vmem:[%s1 + $0xa8] sm:$0xf]
  %v78 = vld [vmem:[%s1 + $0xac] sm:$0xf]
  %v79 = vld [vmem:[%s1 + $0xb0] sm:$0xf]
  %v80 = vld [vmem:[%s1 + $0xb4] sm:$0xf]
  %v81 = vld [vmem:[%s1 + $0xb8] sm:$0xf]
  %v82 = vld [vmem:[%s1 + $0xbc] sm:$0xf]
  %v83 = vld [vmem:[%s1 + $0xc0] sm:$0xf]
  %v84 = vld [vmem:[%s1 + $0xc4] sm:$0xf]
  %v85 = vld [vmem:[%s1 + $0xc8] sm:$0xf]
  %v86 = vld [vmem:[%s1 + $0xcc] sm:$0xf]
  %v87 = vld [vmem:[%s1 + $0xd0] sm:$0xf]
  %v88 = vld [vmem:[%s1 + $0xd4] sm:$0xf]
  %v89 = vld [vmem:[%s1 + $0xd8] sm:$0xf]
  %v90 = vld [vmem:[%s1 + $0xdc] sm:$0xf]
  %v91 = vld [vmem:[%s1 + $0xe0] sm:$0xf]
  %v92 = vld [vmem:[%s1 + $0xe4] sm:$0xf]
  %v93 = vld [vmem:[%s1 + $0xe8] sm:$0xf]
  %v94 = vld [vmem:[%s1 + $0xec] sm:$0xf]
  %v95 = vld [vmem:[%s1 + $0xf0] sm:$0xf]
  %v96 = vld [vmem:[%s1 + $0xf4] sm:$0xf]
  %v97 = vld [vmem:[%s1 + $0xf8] sm:$0xf]
  %v98 = vld [vmem:[%s1 + $0xfc] sm:$0xf]
  %v107 = vunpack.c.l.b16 %v27
  %v108 = vunpack.c.h.b16 %v27
  %v109 = vunpack.c.l.b16 %v28
  %v110 = vunpack.c.h.b16 %v28
  %v111 = vunpack.c.l.b16 %v29
  %v112 = vunpack.c.h.b16 %v29
  %v113 = vunpack.c.l.b16 %v30
  %v114 = vunpack.c.h.b16 %v30
  %v115 = vunpack.c.l.b16 %v31
  %v116 = vunpack.c.h.b16 %v31
  %v117 = vunpack.c.l.b16 %v32
  %v118 = vunpack.c.h.b16 %v32
  %v119 = vunpack.c.l.b16 %v33
  %v120 = vunpack.c.h.b16 %v33
  %v121 = vunpack.c.l.b16 %v34
  %v122 = vunpack.c.h.b16 %v34
  %v123 = vpack.c.b16 %v111, %v107
  %v124 = vpack.c.b16 %v112, %v108
  %v125 = vpack.c.b16 %v113, %v109
  %v126 = vpack.c.b16 %v114, %v110
  %v127 = vpack.c.b16 %v119, %v115
  %v128 = vpack.c.b16 %v120, %v116
  %v129 = vpack.c.b16 %v121, %v117
  %v130 = vpack.c.b16 %v122, %v118
  %v203 = vunpack.c.l.b16 %v35
  %v204 = vunpack.c.l.b16 %v36
  %v205 = vunpack.c.l.b16 %v37
  %v206 = vunpack.c.l.b16 %v38
  %v207 = vunpack.c.l.b16 %v39
  %v208 = vunpack.c.l.b16 %v40
  %v209 = vunpack.c.l.b16 %v41
  %v210 = vunpack.c.l.b16 %v42
  %v211 = vunpack.c.l.b16 %v43
  %v212 = vunpack.c.l.b16 %v44
  %v213 = vunpack.c.l.b16 %v45
  %v214 = vunpack.c.l.b16 %v46
  %v215 = vunpack.c.l.b16 %v47
  %v216 = vunpack.c.l.b16 %v48
  %v217 = vunpack.c.l.b16 %v49
  %v218 = vunpack.c.l.b16 %v50
  %v219 = vunpack.c.l.b16 %v51
  %v220 = vunpack.c.l.b16 %v52
  %v221 = vunpack.c.l.b16 %v53
  %v222 = vunpack.c.l.b16 %v54
  %v223 = vunpack.c.l.b16 %v55
  %v224 = vunpack.c.l.b16 %v56
  %v225 = vunpack.c.l.b16 %v57
  %v226 = vunpack.c.l.b16 %v58
  %v227 = vunpack.c.l.b16 %v59
  %v228 = vunpack.c.l.b16 %v60
  %v229 = vunpack.c.l.b16 %v61
  %v230 = vunpack.c.l.b16 %v62
  %v231 = vunpack.c.l.b16 %v63
  %v232 = vunpack.c.l.b16 %v64
  %v233 = vunpack.c.l.b16 %v65
  %v234 = vunpack.c.l.b16 %v66
  %v235 = vunpack.c.l.b16 %v67
  %v236 = vunpack.c.l.b16 %v68
  %v237 = vunpack.c.l.b16 %v69
  %v238 = vunpack.c.l.b16 %v70
  %v239 = vunpack.c.l.b16 %v71
  %v240 = vunpack.c.l.b16 %v72
  %v241 = vunpack.c.l.b16 %v73
  %v242 = vunpack.c.l.b16 %v74
  %v243 = vunpack.c.l.b16 %v75
  %v244 = vunpack.c.l.b16 %v76
  %v245 = vunpack.c.l.b16 %v77
  %v246 = vunpack.c.l.b16 %v78
  %v247 = vunpack.c.l.b16 %v79
  %v248 = vunpack.c.l.b16 %v80
  %v249 = vunpack.c.l.b16 %v81
  %v250 = vunpack.c.l.b16 %v82
  %v251 = vunpack.c.l.b16 %v83
  %v252 = vunpack.c.l.b16 %v84
  %v253 = vunpack.c.l.b16 %v85
  %v254 = vunpack.c.l.b16 %v86
  %v255 = vunpack.c.l.b16 %v87
  %v256 = vunpack.c.l.b16 %v88
  %v257 = vunpack.c.l.b16 %v89
  %v258 = vunpack.c.l.b16 %v90
  %v259 = vunpack.c.l.b16 %v91
  %v260 = vunpack.c.l.b16 %v92
  %v261 = vunpack.c.l.b16 %v93
  %v262 = vunpack.c.l.b16 %v94
  %v263 = vunpack.c.l.b16 %v95
  %v264 = vunpack.c.l.b16 %v96
  %v265 = vunpack.c.l.b16 %v97
  %v266 = vunpack.c.l.b16 %v98
  %v267 = vpack.c.b16 %v204, %v203
  %v268 = vpack.c.b16 %v206, %v205
  %v269 = vpack.c.b16 %v208, %v207
  %v270 = vpack.c.b16 %v210, %v209
  %v271 = vpack.c.b16 %v212, %v211
  %v272 = vpack.c.b16 %v214, %v213
  %v273 = vpack.c.b16 %v216, %v215
  %v274 = vpack.c.b16 %v218, %v217
  %v275 = vpack.c.b16 %v220, %v219
  %v276 = vpack.c.b16 %v222, %v221
  %v277 = vpack.c.b16 %v224, %v223
  %v278 = vpack.c.b16 %v226, %v225
  %v279 = vpack.c.b16 %v228, %v227
  %v280 = vpack.c.b16 %v230, %v229
  %v281 = vpack.c.b16 %v232, %v231
  %v282 = vpack.c.b16 %v234, %v233
  %v283 = vpack.c.b16 %v236, %v235
  %v284 = vpack.c.b16 %v238, %v237
  %v285 = vpack.c.b16 %v240, %v239
  %v286 = vpack.c.b16 %v242, %v241
  %v287 = vpack.c.b16 %v244, %v243
  %v288 = vpack.c.b16 %v246, %v245
  %v289 = vpack.c.b16 %v248, %v247
  %v290 = vpack.c.b16 %v250, %v249
  %v291 = vpack.c.b16 %v252, %v251
  %v292 = vpack.c.b16 %v254, %v253
  %v293 = vpack.c.b16 %v256, %v255
  %v294 = vpack.c.b16 %v258, %v257
  %v295 = vpack.c.b16 %v260, %v259
  %v296 = vpack.c.b16 %v262, %v261
  %v297 = vpack.c.b16 %v264, %v263
  %v298 = vpack.c.b16 %v266, %v265
  %331 = vmatprep.subr.bf16.mxu0 0
  %332 = vmatpush1.bf16.msra.mxu0 %v274
  %333 = vmatprep.subr.bf16.mxu0 0
  %334 = vmatpush1.bf16.msra.mxu0 %v273
  %335 = vmatprep.subr.bf16.mxu0 0
  %336 = vmatpush1.bf16.msra.mxu0 %v272
  %337 = vmatprep.subr.bf16.mxu0 0
  %338 = vmatpush1.bf16.msra.mxu0 %v271
  %339 = vmatprep.subr.bf16.mxu0 0
  %340 = vmatpush1.bf16.msra.mxu0 %v270
  %341 = vmatprep.subr.bf16.mxu0 0
  %342 = vmatpush1.bf16.msra.mxu0 %v269
  %343 = vmatprep.subr.bf16.mxu0 0
  %344 = vmatpush1.bf16.msra.mxu0 %v268
  %345 = vmatprep.subr.bf16.mxu0 0
  %346 = vmatpush1.bf16.msra.mxu0 %v267
  %347 = vmatprep.subr.bf16.mxu0 0
  %348 = vmatpush2.bf16.msra.mxu0 %v282
  %349 = vmatprep.subr.bf16.mxu0 0
  %350 = vmatpush2.bf16.msra.mxu0 %v281
  %351 = vmatprep.subr.bf16.mxu0 0
  %352 = vmatpush2.bf16.msra.mxu0 %v280
  %353 = vmatprep.subr.bf16.mxu0 0
  %354 = vmatpush2.bf16.msra.mxu0 %v279
  %355 = vmatprep.subr.bf16.mxu0 0
  %356 = vmatpush2.bf16.msra.mxu0 %v278
  %357 = vmatprep.subr.bf16.mxu0 0
  %358 = vmatpush2.bf16.msra.mxu0 %v277
  %359 = vmatprep.subr.bf16.mxu0 0
  %360 = vmatpush2.bf16.msra.mxu0 %v276
  %361 = vmatprep.subr.bf16.mxu0 0
  %362 = vmatpush2.bf16.msra.mxu0 %v275
  %363 = vmatprep.mubr.bf16.mxu0 %v124
  %364 = vmatmul.mubr.bf16.gmra.mxu0 %v123
  %v365 = vpop.f32.mrf.mxu0
  %v366 = vadd.f32 0.0, %v365
  %v367 = vpop.f32.mrf.mxu0
  %v368 = vpop.f32.mrf.mxu0
  %v369 = vadd.f32 0.0, %v368
  %v370 = vpop.f32.mrf.mxu0
  %371 = vmatprep.mubr.bf16.mxu0 %v128
  %372 = vmatmul.mubr.bf16.gmra.mxu0 %v127
  %v373 = vpop.f32.mrf.mxu0
  %v374 = vadd.f32 0.0, %v373
  %v375 = vpop.f32.mrf.mxu0
  %v376 = vpop.f32.mrf.mxu0
  %v377 = vadd.f32 0.0, %v376
  %v378 = vpop.f32.mrf.mxu0
  %379 = vdwg.mxu0
  %380 = vmatprep.subr.bf16.mxu0 0
  %381 = vmatpush1.bf16.msra.mxu0 %v290
  %382 = vmatprep.subr.bf16.mxu0 0
  %383 = vmatpush1.bf16.msra.mxu0 %v289
  %384 = vmatprep.subr.bf16.mxu0 0
  %385 = vmatpush1.bf16.msra.mxu0 %v288
  %386 = vmatprep.subr.bf16.mxu0 0
  %387 = vmatpush1.bf16.msra.mxu0 %v287
  %388 = vmatprep.subr.bf16.mxu0 0
  %389 = vmatpush1.bf16.msra.mxu0 %v286
  %390 = vmatprep.subr.bf16.mxu0 0
  %391 = vmatpush1.bf16.msra.mxu0 %v285
  %392 = vmatprep.subr.bf16.mxu0 0
  %393 = vmatpush1.bf16.msra.mxu0 %v284
  %394 = vmatprep.subr.bf16.mxu0 0
  %395 = vmatpush1.bf16.msra.mxu0 %v283
  %396 = vmatprep.subr.bf16.mxu0 0
  %397 = vmatpush2.bf16.msra.mxu0 %v298
  %398 = vmatprep.subr.bf16.mxu0 0
  %399 = vmatpush2.bf16.msra.mxu0 %v297
  %400 = vmatprep.subr.bf16.mxu0 0
  %401 = vmatpush2.bf16.msra.mxu0 %v296
  %402 = vmatprep.subr.bf16.mxu0 0
  %403 = vmatpush2.bf16.msra.mxu0 %v295
  %404 = vmatprep.subr.bf16.mxu0 0
  %405 = vmatpush2.bf16.msra.mxu0 %v294
  %406 = vmatprep.subr.bf16.mxu0 0
  %407 = vmatpush2.bf16.msra.mxu0 %v293
  %408 = vmatprep.subr.bf16.mxu0 0
  %409 = vmatpush2.bf16.msra.mxu0 %v292
  %410 = vmatprep.subr.bf16.mxu0 0
  %411 = vmatpush2.bf16.msra.mxu0 %v291
  %412 = vmatprep.mubr.bf16.mxu0 %v126
  %413 = vmatmul.mubr.bf16.gmra.mxu0 %v125
  %v414 = vpop.f32.mrf.mxu0
  %v415 = vadd.f32 %v366, %v414
  %v416 = vpop.f32.mrf.mxu0
  %v417 = vpop.f32.mrf.mxu0
  %v418 = vadd.f32 %v369, %v417
  %v419 = vpop.f32.mrf.mxu0
  %420 = vmatprep.mubr.bf16.mxu0 %v130
  %421 = vmatmul.mubr.bf16.gmra.mxu0 %v129
  %v422 = vpop.f32.mrf.mxu0
  %v423 = vadd.f32 %v374, %v422
  %v424 = vpop.f32.mrf.mxu0
  %v425 = vpop.f32.mrf.mxu0
  %v426 = vadd.f32 %v377, %v425
  %v427 = vpop.f32.mrf.mxu0
  %428 = vdwg.mxu0
  %v429 = vadd.f32 %v23, %v415
  %v430 = vadd.f32 %v24, %v418
  %v431 = vadd.f32 %v25, %v423
  %v432 = vadd.f32 %v26, %v426
  %433 = vst [vmem:[#allocation2] sm:$0xff] %v429
  %434 = vst [vmem:[#allocation2 + $0x8] sm:$0xff] %v430
  %435 = vst [vmem:[#allocation2 + $0x10] sm:$0xff] %v431
  %436 = vst [vmem:[#allocation2 + $0x18] sm:$0xff] %v432
  // Predicated region
  $region18: #{actor_forward.5} parent=0 // pred_check
    %p437 = pneg %p15
  $region19: #{actor_forward.5} parent=0 // pred_check_branch
    %439 = sbr.rel (%p437) target = $region21
  $region20: #{actor_forward.5} parent=0 // pred_region
    %v440 = vld [vmem:[#allocation2] sm:$0xff]
    %v441 = vld [vmem:[#allocation2 + $0x8] sm:$0xff]
    %v442 = vld [vmem:[#allocation2 + $0x10] sm:$0xff]
    %v443 = vld [vmem:[#allocation2 + $0x18] sm:$0xff]
    %v444 = vld [vmem:[%s2] sm:$0x1]
    %v446 = vlaneseq
    %v447 = vshrl.u32 %v446, 7
    %v448 = vsub.s32 0, %v447
    %v449 = vrot.slane %v444, %v448
    %v451 = vadd.f32 %v440, %v449
    %v452 = vadd.f32 %v441, %v449
    %v453 = vadd.f32 %v442, %v449
    %v454 = vadd.f32 %v443, %v449
    %v455 = vmax.f32 %v451, 0.0
    %v456 = vmax.f32 %v452, 0.0
    %v457 = vmax.f32 %v453, 0.0
    %v458 = vmax.f32 %v454, 0.0
    %459 = vst [vmem:[%s3] sm:$0xff] %v455
    %460 = vst [vmem:[%s3 + $0x8] sm:$0xff] %v456
    %461 = vst [vmem:[%s3 + $0x10] sm:$0xff] %v457
    %462 = vst [vmem:[%s3 + $0x18] sm:$0xff] %v458
  $region21: #{actor_forward.5} parent=0 // pred_fallthru
    _
  // Predicated region
  $region22: #{actor_forward.5} parent=0 // pred_check
    _
  $region23: #{actor_forward.5} parent=0 // pred_check_branch
    %464 = sbr.rel (0) target = $region25
  $region24: #{actor_forward.5} parent=0 // pred_region
    _
  $region25: #{actor_forward.5} parent=0 // pred_fallthru
    _
  // Predicated region
  $region26: #{actor_forward.5} parent=0 // pred_check
    _
  $region27: #{actor_forward.5} parent=0 // pred_check_branch
    %466 = sbr.rel (0) target = $region29
  $region28: #{actor_forward.5} parent=0 // pred_region
    _
  $region29: #{actor_forward.5} parent=0 // pred_fallthru
    _

// kernel: actor_forward.6
$region0: #{actor_forward.6}
  #allocation0 [shape = 'u32[]', space=smem, size = 0x4, offset = 0x4, fixed_abs, tag = 'smem constant byte address 0x4 - core index']
  #allocation1 [shape = 'u32[144,128]{1,0:T(1,128)}', space=vmem, size = 0x12000, scoped, tag = 'internal scratch']
  #allocation2 [shape = 'f32[32,128]{1,0:T(8,128)}', space=vmem, size = 0x4000, scoped, tag = 'scratch operand']
  %s0 = inlined_call_operand.vmem [shape: bf16[32,640], index: 0, kind: input, shape index: {}]
  %s1 = inlined_call_operand.vmem [shape: bf16[640,128], index: 1, kind: input, shape index: {}]
  %s2 = inlined_call_operand.vmem [shape: f32[1,128], index: 2, kind: input, shape index: {}]
  %s3 = inlined_call_operand.vmem [shape: f32[32,128], index: 3, kind: output, shape index: {}]
  %s4 = sld [smem:[#allocation0]]
  $region30: #{actor_forward.6} parent=0
    _
  %s6 = ssub.s32 1, %s4
  %s7 = scalar_select 0, %s6, %s4
  // Predicated region
  $region2: #{actor_forward.6} parent=0 // pred_check
    _
  $region3: #{actor_forward.6} parent=0 // pred_check_branch
    %9 = sbr.rel (0) target = $region5
  $region4: #{actor_forward.6} parent=0 // pred_region
    _
  $region5: #{actor_forward.6} parent=0 // pred_fallthru
    _
  // Predicated region
  $region6: #{actor_forward.6} parent=0 // pred_check
    _
  $region7: #{actor_forward.6} parent=0 // pred_check_branch
    %11 = sbr.rel (0) target = $region9
  $region8: #{actor_forward.6} parent=0 // pred_region
    _
  $region9: #{actor_forward.6} parent=0 // pred_fallthru
    _
  // Predicated region
  $region10: #{actor_forward.6} parent=0 // pred_check
    _
  $region11: #{actor_forward.6} parent=0 // pred_check_branch
    %13 = sbr.rel (0) target = $region13
  $region12: #{actor_forward.6} parent=0 // pred_region
    _
  $region13: #{actor_forward.6} parent=0 // pred_fallthru
    _
  %p15 = scmp.eq.s32.totalorder 0, 0
  // Predicated region
  $region14: #{actor_forward.6} parent=0 // pred_check
    %p16 = pneg %p15
  $region15: #{actor_forward.6} parent=0 // pred_check_branch
    %18 = sbr.rel (%p16) target = $region17
  $region16: #{actor_forward.6} parent=0 // pred_region
    %19 = vst [vmem:[#allocation2] sm:$0xff] 0.0
    %20 = vst [vmem:[#allocation2 + $0x8] sm:$0xff] 0.0
    %21 = vst [vmem:[#allocation2 + $0x10] sm:$0xff] 0.0
    %22 = vst [vmem:[#allocation2 + $0x18] sm:$0xff] 0.0
  $region17: #{actor_forward.6} parent=0 // pred_fallthru
    _
  %v23 = vld [vmem:[#allocation2] sm:$0xff]
  %v24 = vld [vmem:[#allocation2 + $0x8] sm:$0xff]
  %v25 = vld [vmem:[#allocation2 + $0x10] sm:$0xff]
  %v26 = vld [vmem:[#allocation2 + $0x18] sm:$0xff]
  %v27 = vld [vmem:[%s0] sm:$0xff]
  %v28 = vld [vmem:[%s0 + $0x8] sm:$0xff]
  %v29 = vld [vmem:[%s0 + $0x10] sm:$0xf]
  %v30 = vld [vmem:[%s0 + $0x14] sm:$0xff]
  %v31 = vld [vmem:[%s0 + $0x1c] sm:$0xff]
  %v32 = vld [vmem:[%s0 + $0x24] sm:$0xf]
  %v33 = vld [vmem:[%s0 + $0x28] sm:$0xff]
  %v34 = vld [vmem:[%s0 + $0x30] sm:$0xff]
  %v35 = vld [vmem:[%s0 + $0x38] sm:$0xf]
  %v36 = vld [vmem:[%s0 + $0x3c] sm:$0xff]
  %v37 = vld [vmem:[%s0 + $0x44] sm:$0xff]
  %v38 = vld [vmem:[%s0 + $0x4c] sm:$0xf]
  %v39 = vld [vmem:[%s1] sm:$0xf]
  %v40 = vld [vmem:[%s1 + $0x4] sm:$0xf]
  %v41 = vld [vmem:[%s1 + $0x8] sm:$0xf]
  %v42 = vld [vmem:[%s1 + $0xc] sm:$0xf]
  %v43 = vld [vmem:[%s1 + $0x10] sm:$0xf]
  %v44 = vld [vmem:[%s1 + $0x14] sm:$0xf]
  %v45 = vld [vmem:[%s1 + $0x18] sm:$0xf]
  %v46 = vld [vmem:[%s1 + $0x1c] sm:$0xf]
  %v47 = vld [vmem:[%s1 + $0x20] sm:$0xf]
  %v48 = vld [vmem:[%s1 + $0x24] sm:$0xf]
  %v49 = vld [vmem:[%s1 + $0x28] sm:$0xf]
  %v50 = vld [vmem:[%s1 + $0x2c] sm:$0xf]
  %v51 = vld [vmem:[%s1 + $0x30] sm:$0xf]
  %v52 = vld [vmem:[%s1 + $0x34] sm:$0xf]
  %v53 = vld [vmem:[%s1 + $0x38] sm:$0xf]
  %v54 = vld [vmem:[%s1 + $0x3c] sm:$0xf]
  %v55 = vld [vmem:[%s1 + $0x40] sm:$0xf]
  %v56 = vld [vmem:[%s1 + $0x44] sm:$0xf]
  %v57 = vld [vmem:[%s1 + $0x48] sm:$0xf]
  %v58 = vld [vmem:[%s1 + $0x4c] sm:$0xf]
  %v59 = vld [vmem:[%s1 + $0x50] sm:$0xf]
  %v60 = vld [vmem:[%s1 + $0x54] sm:$0xf]
  %v61 = vld [vmem:[%s1 + $0x58] sm:$0xf]
  %v62 = vld [vmem:[%s1 + $0x5c] sm:$0xf]
  %v63 = vld [vmem:[%s1 + $0x60] sm:$0xf]
  %v64 = vld [vmem:[%s1 + $0x64] sm:$0xf]
  %v65 = vld [vmem:[%s1 + $0x68] sm:$0xf]
  %v66 = vld [vmem:[%s1 + $0x6c] sm:$0xf]
  %v67 = vld [vmem:[%s1 + $0x70] sm:$0xf]
  %v68 = vld [vmem:[%s1 + $0x74] sm:$0xf]
  %v69 = vld [vmem:[%s1 + $0x78] sm:$0xf]
  %v70 = vld [vmem:[%s1 + $0x7c] sm:$0xf]
  %v71 = vld [vmem:[%s1 + $0x80] sm:$0xf]
  %v72 = vld [vmem:[%s1 + $0x84] sm:$0xf]
  %v73 = vld [vmem:[%s1 + $0x88] sm:$0xf]
  %v74 = vld [vmem:[%s1 + $0x8c] sm:$0xf]
  %v75 = vld [vmem:[%s1 + $0x90] sm:$0xf]
  %v76 = vld [vmem:[%s1 + $0x94] sm:$0xf]
  %v77 = vld [vmem:[%s1 + $0x98] sm:$0xf]
  %v78 = vld [vmem:[%s1 + $0x9c] sm:$0xf]
  %v79 = vld [vmem:[%s1 + $0xa0] sm:$0xf]
  %v80 = vld [vmem:[%s1 + $0xa4] sm:$0xf]
  %v81 = vld [vmem:[%s1 + $0xa8] sm:$0xf]
  %v82 = vld [vmem:[%s1 + $0xac] sm:$0xf]
  %v83 = vld [vmem:[%s1 + $0xb0] sm:$0xf]
  %v84 = vld [vmem:[%s1 + $0xb4] sm:$0xf]
  %v85 = vld [vmem:[%s1 + $0xb8] sm:$0xf]
  %v86 = vld [vmem:[%s1 + $0xbc] sm:$0xf]
  %v87 = vld [vmem:[%s1 + $0xc0] sm:$0xf]
  %v88 = vld [vmem:[%s1 + $0xc4] sm:$0xf]
  %v89 = vld [vmem:[%s1 + $0xc8] sm:$0xf]
  %v90 = vld [vmem:[%s1 + $0xcc] sm:$0xf]
  %v91 = vld [vmem:[%s1 + $0xd0] sm:$0xf]
  %v92 = vld [vmem:[%s1 + $0xd4] sm:$0xf]
  %v93 = vld [vmem:[%s1 + $0xd8] sm:$0xf]
  %v94 = vld [vmem:[%s1 + $0xdc] sm:$0xf]
  %v95 = vld [vmem:[%s1 + $0xe0] sm:$0xf]
  %v96 = vld [vmem:[%s1 + $0xe4] sm:$0xf]
  %v97 = vld [vmem:[%s1 + $0xe8] sm:$0xf]
  %v98 = vld [vmem:[%s1 + $0xec] sm:$0xf]
  %v99 = vld [vmem:[%s1 + $0xf0] sm:$0xf]
  %v100 = vld [vmem:[%s1 + $0xf4] sm:$0xf]
  %v101 = vld [vmem:[%s1 + $0xf8] sm:$0xf]
  %v102 = vld [vmem:[%s1 + $0xfc] sm:$0xf]
  %v103 = vld [vmem:[%s1 + $0x100] sm:$0xf]
  %v104 = vld [vmem:[%s1 + $0x104] sm:$0xf]
  %v105 = vld [vmem:[%s1 + $0x108] sm:$0xf]
  %v106 = vld [vmem:[%s1 + $0x10c] sm:$0xf]
  %v107 = vld [vmem:[%s1 + $0x110] sm:$0xf]
  %v108 = vld [vmem:[%s1 + $0x114] sm:$0xf]
  %v109 = vld [vmem:[%s1 + $0x118] sm:$0xf]
  %v110 = vld [vmem:[%s1 + $0x11c] sm:$0xf]
  %v111 = vld [vmem:[%s1 + $0x120] sm:$0xf]
  %v112 = vld [vmem:[%s1 + $0x124] sm:$0xf]
  %v113 = vld [vmem:[%s1 + $0x128] sm:$0xf]
  %v114 = vld [vmem:[%s1 + $0x12c] sm:$0xf]
  %v115 = vld [vmem:[%s1 + $0x130] sm:$0xf]
  %v116 = vld [vmem:[%s1 + $0x134] sm:$0xf]
  %v117 = vld [vmem:[%s1 + $0x138] sm:$0xf]
  %v118 = vld [vmem:[%s1 + $0x13c] sm:$0xf]
  %v131 = vunpack.c.l.b16 %v27
  %v132 = vunpack.c.h.b16 %v27
  %v133 = vunpack.c.l.b16 %v28
  %v134 = vunpack.c.h.b16 %v28
  %v135 = vunpack.c.l.b16 %v29
  %v136 = vunpack.c.l.b16 %v30
  %v137 = vunpack.c.h.b16 %v30
  %v138 = vunpack.c.l.b16 %v31
  %v139 = vunpack.c.h.b16 %v31
  %v140 = vunpack.c.l.b16 %v32
  %v141 = vunpack.c.l.b16 %v33
  %v142 = vunpack.c.h.b16 %v33
  %v143 = vunpack.c.l.b16 %v34
  %v144 = vunpack.c.h.b16 %v34
  %v145 = vunpack.c.l.b16 %v35
  %v146 = vunpack.c.l.b16 %v36
  %v147 = vunpack.c.h.b16 %v36
  %v148 = vunpack.c.l.b16 %v37
  %v149 = vunpack.c.h.b16 %v37
  %v150 = vunpack.c.l.b16 %v38
  %v151 = vpack.c.b16 %v136, %v131
  %v152 = vpack.c.b16 %v137, %v132
  %v153 = vpack.c.b16 %v138, %v133
  %v154 = vpack.c.b16 %v139, %v134
  %v155 = vpack.c.b16 %v140, %v135
  %v156 = vpack.c.b16 %v146, %v141
  %v157 = vpack.c.b16 %v147, %v142
  %v158 = vpack.c.b16 %v148, %v143
  %v159 = vpack.c.b16 %v149, %v144
  %v160 = vpack.c.b16 %v150, %v145
  %v251 = vunpack.c.l.b16 %v39
  %v252 = vunpack.c.l.b16 %v40
  %v253 = vunpack.c.l.b16 %v41
  %v254 = vunpack.c.l.b16 %v42
  %v255 = vunpack.c.l.b16 %v43
  %v256 = vunpack.c.l.b16 %v44
  %v257 = vunpack.c.l.b16 %v45
  %v258 = vunpack.c.l.b16 %v46
  %v259 = vunpack.c.l.b16 %v47
  %v260 = vunpack.c.l.b16 %v48
  %v261 = vunpack.c.l.b16 %v49
  %v262 = vunpack.c.l.b16 %v50
  %v263 = vunpack.c.l.b16 %v51
  %v264 = vunpack.c.l.b16 %v52
  %v265 = vunpack.c.l.b16 %v53
  %v266 = vunpack.c.l.b16 %v54
  %v267 = vunpack.c.l.b16 %v55
  %v268 = vunpack.c.l.b16 %v56
  %v269 = vunpack.c.l.b16 %v57
  %v270 = vunpack.c.l.b16 %v58
  %v271 = vunpack.c.l.b16 %v59
  %v272 = vunpack.c.l.b16 %v60
  %v273 = vunpack.c.l.b16 %v61
  %v274 = vunpack.c.l.b16 %v62
  %v275 = vunpack.c.l.b16 %v63
  %v276 = vunpack.c.l.b16 %v64
  %v277 = vunpack.c.l.b16 %v65
  %v278 = vunpack.c.l.b16 %v66
  %v279 = vunpack.c.l.b16 %v67
  %v280 = vunpack.c.l.b16 %v68
  %v281 = vunpack.c.l.b16 %v69
  %v282 = vunpack.c.l.b16 %v70
  %v283 = vunpack.c.l.b16 %v71
  %v284 = vunpack.c.l.b16 %v72
  %v285 = vunpack.c.l.b16 %v73
  %v286 = vunpack.c.l.b16 %v74
  %v287 = vunpack.c.l.b16 %v75
  %v288 = vunpack.c.l.b16 %v76
  %v289 = vunpack.c.l.b16 %v77
  %v290 = vunpack.c.l.b16 %v78
  %v291 = vunpack.c.l.b16 %v79
  %v292 = vunpack.c.l.b16 %v80
  %v293 = vunpack.c.l.b16 %v81
  %v294 = vunpack.c.l.b16 %v82
  %v295 = vunpack.c.l.b16 %v83
  %v296 = vunpack.c.l.b16 %v84
  %v297 = vunpack.c.l.b16 %v85
  %v298 = vunpack.c.l.b16 %v86
  %v299 = vunpack.c.l.b16 %v87
  %v300 = vunpack.c.l.b16 %v88
  %v301 = vunpack.c.l.b16 %v89
  %v302 = vunpack.c.l.b16 %v90
  %v303 = vunpack.c.l.b16 %v91
  %v304 = vunpack.c.l.b16 %v92
  %v305 = vunpack.c.l.b16 %v93
  %v306 = vunpack.c.l.b16 %v94
  %v307 = vunpack.c.l.b16 %v95
  %v308 = vunpack.c.l.b16 %v96
  %v309 = vunpack.c.l.b16 %v97
  %v310 = vunpack.c.l.b16 %v98
  %v311 = vunpack.c.l.b16 %v99
  %v312 = vunpack.c.l.b16 %v100
  %v313 = vunpack.c.l.b16 %v101
  %v314 = vunpack.c.l.b16 %v102
  %v315 = vunpack.c.l.b16 %v103
  %v316 = vunpack.c.l.b16 %v104
  %v317 = vunpack.c.l.b16 %v105
  %v318 = vunpack.c.l.b16 %v106
  %v319 = vunpack.c.l.b16 %v107
  %v320 = vunpack.c.l.b16 %v108
  %v321 = vunpack.c.l.b16 %v109
  %v322 = vunpack.c.l.b16 %v110
  %v323 = vunpack.c.l.b16 %v111
  %v324 = vunpack.c.l.b16 %v112
  %v325 = vunpack.c.l.b16 %v113
  %v326 = vunpack.c.l.b16 %v114
  %v327 = vunpack.c.l.b16 %v115
  %v328 = vunpack.c.l.b16 %v116
  %v329 = vunpack.c.l.b16 %v117
  %v330 = vunpack.c.l.b16 %v118
  %v331 = vpack.c.b16 %v252, %v251
  %v332 = vpack.c.b16 %v254, %v253
  %v333 = vpack.c.b16 %v256, %v255
  %v334 = vpack.c.b16 %v258, %v257
  %v335 = vpack.c.b16 %v260, %v259
  %v336 = vpack.c.b16 %v262, %v261
  %v337 = vpack.c.b16 %v264, %v263
  %v338 = vpack.c.b16 %v266, %v265
  %v339 = vpack.c.b16 %v268, %v267
  %v340 = vpack.c.b16 %v270, %v269
  %v341 = vpack.c.b16 %v272, %v271
  %v342 = vpack.c.b16 %v274, %v273
  %v343 = vpack.c.b16 %v276, %v275
  %v344 = vpack.c.b16 %v278, %v277
  %v345 = vpack.c.b16 %v280, %v279
  %v346 = vpack.c.b16 %v282, %v281
  %v347 = vpack.c.b16 %v284, %v283
  %v348 = vpack.c.b16 %v286, %v285
  %v349 = vpack.c.b16 %v288, %v287
  %v350 = vpack.c.b16 %v290, %v289
  %v351 = vpack.c.b16 %v292, %v291
  %v352 = vpack.c.b16 %v294, %v293
  %v353 = vpack.c.b16 %v296, %v295
  %v354 = vpack.c.b16 %v298, %v297
  %v355 = vpack.c.b16 %v300, %v299
  %v356 = vpack.c.b16 %v302, %v301
  %v357 = vpack.c.b16 %v304, %v303
  %v358 = vpack.c.b16 %v306, %v305
  %v359 = vpack.c.b16 %v308, %v307
  %v360 = vpack.c.b16 %v310, %v309
  %v361 = vpack.c.b16 %v312, %v311
  %v362 = vpack.c.b16 %v314, %v313
  %v363 = vpack.c.b16 %v316, %v315
  %v364 = vpack.c.b16 %v318, %v317
  %v365 = vpack.c.b16 %v320, %v319
  %v366 = vpack.c.b16 %v322, %v321
  %v367 = vpack.c.b16 %v324, %v323
  %v368 = vpack.c.b16 %v326, %v325
  %v369 = vpack.c.b16 %v328, %v327
  %v370 = vpack.c.b16 %v330, %v329
  %411 = vmatprep.subr.bf16.mxu0 0
  %412 = vmatpush1.bf16.msra.mxu0 %v338
  %413 = vmatprep.subr.bf16.mxu0 0
  %414 = vmatpush1.bf16.msra.mxu0 %v337
  %415 = vmatprep.subr.bf16.mxu0 0
  %416 = vmatpush1.bf16.msra.mxu0 %v336
  %417 = vmatprep.subr.bf16.mxu0 0
  %418 = vmatpush1.bf16.msra.mxu0 %v335
  %419 = vmatprep.subr.bf16.mxu0 0
  %420 = vmatpush1.bf16.msra.mxu0 %v334
  %421 = vmatprep.subr.bf16.mxu0 0
  %422 = vmatpush1.bf16.msra.mxu0 %v333
  %423 = vmatprep.subr.bf16.mxu0 0
  %424 = vmatpush1.bf16.msra.mxu0 %v332
  %425 = vmatprep.subr.bf16.mxu0 0
  %426 = vmatpush1.bf16.msra.mxu0 %v331
  %427 = vmatprep.subr.bf16.mxu0 0
  %428 = vmatpush2.bf16.msra.mxu0 %v346
  %429 = vmatprep.subr.bf16.mxu0 0
  %430 = vmatpush2.bf16.msra.mxu0 %v345
  %431 = vmatprep.subr.bf16.mxu0 0
  %432 = vmatpush2.bf16.msra.mxu0 %v344
  %433 = vmatprep.subr.bf16.mxu0 0
  %434 = vmatpush2.bf16.msra.mxu0 %v343
  %435 = vmatprep.subr.bf16.mxu0 0
  %436 = vmatpush2.bf16.msra.mxu0 %v342
  %437 = vmatprep.subr.bf16.mxu0 0
  %438 = vmatpush2.bf16.msra.mxu0 %v341
  %439 = vmatprep.subr.bf16.mxu0 0
  %440 = vmatpush2.bf16.msra.mxu0 %v340
  %441 = vmatprep.subr.bf16.mxu0 0
  %442 = vmatpush2.bf16.msra.mxu0 %v339
  %443 = vmatprep.mubr.bf16.mxu0 %v152
  %444 = vmatmul.mubr.bf16.gmra.mxu0 %v151
  %v445 = vpop.f32.mrf.mxu0
  %v446 = vadd.f32 0.0, %v445
  %v447 = vpop.f32.mrf.mxu0
  %v448 = vpop.f32.mrf.mxu0
  %v449 = vadd.f32 0.0, %v448
  %v450 = vpop.f32.mrf.mxu0
  %451 = vmatprep.mubr.bf16.mxu0 %v157
  %452 = vmatmul.mubr.bf16.gmra.mxu0 %v156
  %v453 = vpop.f32.mrf.mxu0
  %v454 = vadd.f32 0.0, %v453
  %v455 = vpop.f32.mrf.mxu0
  %v456 = vpop.f32.mrf.mxu0
  %v457 = vadd.f32 0.0, %v456
  %v458 = vpop.f32.mrf.mxu0
  %459 = vdwg.mxu0
  %460 = vmatprep.subr.bf16.mxu0 0
  %461 = vmatpush1.bf16.msra.mxu0 %v354
  %462 = vmatprep.subr.bf16.mxu0 0
  %463 = vmatpush1.bf16.msra.mxu0 %v353
  %464 = vmatprep.subr.bf16.mxu0 0
  %465 = vmatpush1.bf16.msra.mxu0 %v352
  %466 = vmatprep.subr.bf16.mxu0 0
  %467 = vmatpush1.bf16.msra.mxu0 %v351
  %468 = vmatprep.subr.bf16.mxu0 0
  %469 = vmatpush1.bf16.msra.mxu0 %v350
  %470 = vmatprep.subr.bf16.mxu0 0
  %471 = vmatpush1.bf16.msra.mxu0 %v349
  %472 = vmatprep.subr.bf16.mxu0 0
  %473 = vmatpush1.bf16.msra.mxu0 %v348
  %474 = vmatprep.subr.bf16.mxu0 0
  %475 = vmatpush1.bf16.msra.mxu0 %v347
  %476 = vmatprep.subr.bf16.mxu0 0
  %477 = vmatpush2.bf16.msra.mxu0 %v362
  %478 = vmatprep.subr.bf16.mxu0 0
  %479 = vmatpush2.bf16.msra.mxu0 %v361
  %480 = vmatprep.subr.bf16.mxu0 0
  %481 = vmatpush2.bf16.msra.mxu0 %v360
  %482 = vmatprep.subr.bf16.mxu0 0
  %483 = vmatpush2.bf16.msra.mxu0 %v359
  %484 = vmatprep.subr.bf16.mxu0 0
  %485 = vmatpush2.bf16.msra.mxu0 %v358
  %486 = vmatprep.subr.bf16.mxu0 0
  %487 = vmatpush2.bf16.msra.mxu0 %v357
  %488 = vmatprep.subr.bf16.mxu0 0
  %489 = vmatpush2.bf16.msra.mxu0 %v356
  %490 = vmatprep.subr.bf16.mxu0 0
  %491 = vmatpush2.bf16.msra.mxu0 %v355
  %492 = vmatprep.mubr.bf16.mxu0 %v154
  %493 = vmatmul.mubr.bf16.gmra.mxu0 %v153
  %v494 = vpop.f32.mrf.mxu0
  %v495 = vadd.f32 %v446, %v494
  %v496 = vpop.f32.mrf.mxu0
  %v497 = vpop.f32.mrf.mxu0
  %v498 = vadd.f32 %v449, %v497
  %v499 = vpop.f32.mrf.mxu0
  %500 = vmatprep.mubr.bf16.mxu0 %v159
  %501 = vmatmul.mubr.bf16.gmra.mxu0 %v158
  %v502 = vpop.f32.mrf.mxu0
  %v503 = vadd.f32 %v454, %v502
  %v504 = vpop.f32.mrf.mxu0
  %v505 = vpop.f32.mrf.mxu0
  %v506 = vadd.f32 %v457, %v505
  %v507 = vpop.f32.mrf.mxu0
  %508 = vdwg.mxu0
  %509 = vmatprep.subr.bf16.mxu0 0
  %510 = vmatpush1.bf16.msra.mxu0 %v370
  %511 = vmatprep.subr.bf16.mxu0 0
  %512 = vmatpush1.bf16.msra.mxu0 %v369
  %513 = vmatprep.subr.bf16.mxu0 0
  %514 = vmatpush1.bf16.msra.mxu0 %v368
  %515 = vmatprep.subr.bf16.mxu0 0
  %516 = vmatpush1.bf16.msra.mxu0 %v367
  %517 = vmatprep.subr.bf16.mxu0 0
  %518 = vmatpush1.bf16.msra.mxu0 %v366
  %519 = vmatprep.subr.bf16.mxu0 0
  %520 = vmatpush1.bf16.msra.mxu0 %v365
  %521 = vmatprep.subr.bf16.mxu0 0
  %522 = vmatpush1.bf16.msra.mxu0 %v364
  %523 = vmatprep.subr.bf16.mxu0 0
  %524 = vmatpush1.bf16.msra.mxu0 %v363
  %525 = vmatprep.subr.bf16.mxu0 0
  %526 = vmatpush2.bf16.msra.mxu0 0
  %527 = vmatprep.subr.bf16.mxu0 0
  %528 = vmatpush2.bf16.msra.mxu0 0
  %529 = vmatprep.subr.bf16.mxu0 0
  %530 = vmatpush2.bf16.msra.mxu0 0
  %531 = vmatprep.subr.bf16.mxu0 0
  %532 = vmatpush2.bf16.msra.mxu0 0
  %533 = vmatprep.subr.bf16.mxu0 0
  %534 = vmatpush2.bf16.msra.mxu0 0
  %535 = vmatprep.subr.bf16.mxu0 0
  %536 = vmatpush2.bf16.msra.mxu0 0
  %537 = vmatprep.subr.bf16.mxu0 0
  %538 = vmatpush2.bf16.msra.mxu0 0
  %539 = vmatprep.subr.bf16.mxu0 0
  %540 = vmatpush2.bf16.msra.mxu0 0
  %541 = vmatprep.mubr.bf16.mxu0 0
  %542 = vmatmul.mubr.bf16.gmra.mxu0 %v155
  %v543 = vpop.f32.mrf.mxu0
  %v544 = vadd.f32 %v495, %v543
  %v545 = vpop.f32.mrf.mxu0
  %v546 = vpop.f32.mrf.mxu0
  %v547 = vadd.f32 %v498, %v546
  %v548 = vpop.f32.mrf.mxu0
  %549 = vmatprep.mubr.bf16.mxu0 0
  %550 = vmatmul.mubr.bf16.gmra.mxu0 %v160
  %v551 = vpop.f32.mrf.mxu0
  %v552 = vadd.f32 %v503, %v551
  %v553 = vpop.f32.mrf.mxu0
  %v554 = vpop.f32.mrf.mxu0
  %v555 = vadd.f32 %v506, %v554
  %v556 = vpop.f32.mrf.mxu0
  %557 = vdwg.mxu0
  %v558 = vadd.f32 %v23, %v544
  %v559 = vadd.f32 %v24, %v547
  %v560 = vadd.f32 %v25, %v552
  %v561 = vadd.f32 %v26, %v555
  %562 = vst [vmem:[#allocation2] sm:$0xff] %v558
  %563 = vst [vmem:[#allocation2 + $0x8] sm:$0xff] %v559
  %564 = vst [vmem:[#allocation2 + $0x10] sm:$0xff] %v560
  %565 = vst [vmem:[#allocation2 + $0x18] sm:$0xff] %v561
  // Predicated region
  $region18: #{actor_forward.6} parent=0 // pred_check
    %p566 = pneg %p15
  $region19: #{actor_forward.6} parent=0 // pred_check_branch
    %568 = sbr.rel (%p566) target = $region21
  $region20: #{actor_forward.6} parent=0 // pred_region
    %v569 = vld [vmem:[#allocation2] sm:$0xff]
    %v570 = vld [vmem:[#allocation2 + $0x8] sm:$0xff]
    %v571 = vld [vmem:[#allocation2 + $0x10] sm:$0xff]
    %v572 = vld [vmem:[#allocation2 + $0x18] sm:$0xff]
    %v573 = vld [vmem:[%s2] sm:$0x1]
    %v575 = vlaneseq
    %v576 = vshrl.u32 %v575, 7
    %v577 = vsub.s32 0, %v576
    %v578 = vrot.slane %v573, %v577
    %v580 = vadd.f32 %v569, %v578
    %v581 = vadd.f32 %v570, %v578
    %v582 = vadd.f32 %v571, %v578
    %v583 = vadd.f32 %v572, %v578
    %v584 = vmax.f32 %v580, 0.0
    %v585 = vmax.f32 %v581, 0.0
    %v586 = vmax.f32 %v582, 0.0
    %v587 = vmax.f32 %v583, 0.0
    %588 = vst [vmem:[%s3] sm:$0xff] %v584
    %589 = vst [vmem:[%s3 + $0x8] sm:$0xff] %v585
    %590 = vst [vmem:[%s3 + $0x10] sm:$0xff] %v586
    %591 = vst [vmem:[%s3 + $0x18] sm:$0xff] %v587
  $region21: #{actor_forward.6} parent=0 // pred_fallthru
    _
  // Predicated region
  $region22: #{actor_forward.6} parent=0 // pred_check
    _
  $region23: #{actor_forward.6} parent=0 // pred_check_branch
    %593 = sbr.rel (0) target = $region25
  $region24: #{actor_forward.6} parent=0 // pred_region
    _
  $region25: #{actor_forward.6} parent=0 // pred_fallthru
    _
  // Predicated region
  $region26: #{actor_forward.6} parent=0 // pred_check
    _
  $region27: #{actor_forward.6} parent=0 // pred_check_branch
    %595 = sbr.rel (0) target = $region29
  $region28: #{actor_forward.6} parent=0 // pred_region
    _
  $region29: #{actor_forward.6} parent=0 // pred_fallthru
    _

// kernel: actor_forward.7
$region0: #{actor_forward.7}
  #allocation0 [shape = 'u32[]', space=smem, size = 0x4, offset = 0x4, fixed_abs, tag = 'smem constant byte address 0x4 - core index']
  #allocation1 [shape = 'u32[144,128]{1,0:T(1,128)}', space=vmem, size = 0x12000, scoped, tag = 'internal scratch']
  %s0 = inlined_call_operand.vmem [shape: bf16[8,1024], index: 0, kind: input, shape index: {}]
  %s1 = inlined_call_operand.vmem [shape: bf16[1024,128], index: 1, kind: input, shape index: {}]
  %s2 = inlined_call_operand.vmem [shape: f32[1,128], index: 2, kind: input, shape index: {}]
  %s3 = inlined_call_operand.vmem [shape: bf16[128,128], index: 3, kind: input, shape index: {}]
  %s4 = inlined_call_operand.vmem [shape: f32[1,128], index: 4, kind: input, shape index: {}]
  %s5 = inlined_call_operand.vmem [shape: bf16[128,128], index: 5, kind: input, shape index: {}]
  %s6 = inlined_call_operand.vmem [shape: f32[1,128], index: 6, kind: input, shape index: {}]
  %s7 = inlined_call_operand.vmem [shape: f32[8,128], index: 7, kind: output, shape index: {}]
  %s8 = sld [smem:[#allocation0]]
  $region38: #{actor_forward.7} parent=0
    _
  %s10 = ssub.s32 1, %s8
  %s11 = scalar_select 0, %s10, %s8
  // Predicated region
  $region2: #{actor_forward.7} parent=0 // pred_check
    _
  $region3: #{actor_forward.7} parent=0 // pred_check_branch
    %13 = sbr.rel (0) target = $region5
  $region4: #{actor_forward.7} parent=0 // pred_region
    _
  $region5: #{actor_forward.7} parent=0 // pred_fallthru
    _
  // Predicated region
  $region6: #{actor_forward.7} parent=0 // pred_check
    _
  $region7: #{actor_forward.7} parent=0 // pred_check_branch
    %15 = sbr.rel (0) target = $region9
  $region8: #{actor_forward.7} parent=0 // pred_region
    _
  $region9: #{actor_forward.7} parent=0 // pred_fallthru
    _
  // Predicated region
  $region10: #{actor_forward.7} parent=0 // pred_check
    _
  $region11: #{actor_forward.7} parent=0 // pred_check_branch
    %17 = sbr.rel (0) target = $region13
  $region12: #{actor_forward.7} parent=0 // pred_region
    _
  $region13: #{actor_forward.7} parent=0 // pred_fallthru
    _
  // Predicated region
  $region14: #{actor_forward.7} parent=0 // pred_check
    _
  $region15: #{actor_forward.7} parent=0 // pred_check_branch
    %19 = sbr.rel (0) target = $region17
  $region16: #{actor_forward.7} parent=0 // pred_region
    _
  $region17: #{actor_forward.7} parent=0 // pred_fallthru
    _
  // Predicated region
  $region18: #{actor_forward.7} parent=0 // pred_check
    _
  $region19: #{actor_forward.7} parent=0 // pred_check_branch
    %21 = sbr.rel (0) target = $region21
  $region20: #{actor_forward.7} parent=0 // pred_region
    _
  $region21: #{actor_forward.7} parent=0 // pred_fallthru
    _
  // Predicated region
  $region22: #{actor_forward.7} parent=0 // pred_check
    _
  $region23: #{actor_forward.7} parent=0 // pred_check_branch
    %23 = sbr.rel (0) target = $region25
  $region24: #{actor_forward.7} parent=0 // pred_region
    _
  $region25: #{actor_forward.7} parent=0 // pred_fallthru
    _
  // Predicated region
  $region26: #{actor_forward.7} parent=0 // pred_check
    _
  $region27: #{actor_forward.7} parent=0 // pred_check_branch
    %25 = sbr.rel (0) target = $region29
  $region28: #{actor_forward.7} parent=0 // pred_region
    _
  $region29: #{actor_forward.7} parent=0 // pred_fallthru
    _
  %v27 = vld [vmem:[%s0] sm:$0xff]
  %v28 = vld [vmem:[%s0 + $0x8] sm:$0xff]
  %v29 = vld [vmem:[%s0 + $0x10] sm:$0xff]
  %v30 = vld [vmem:[%s0 + $0x18] sm:$0xff]
  %v31 = vld [vmem:[%s1] sm:$0xf]
  %v32 = vld [vmem:[%s1 + $0x4] sm:$0xf]
  %v33 = vld [vmem:[%s1 + $0x8] sm:$0xf]
  %v34 = vld [vmem:[%s1 + $0xc] sm:$0xf]
  %v35 = vld [vmem:[%s1 + $0x10] sm:$0xf]
  %v36 = vld [vmem:[%s1 + $0x14] sm:$0xf]
  %v37 = vld [vmem:[%s1 + $0x18] sm:$0xf]
  %v38 = vld [vmem:[%s1 + $0x1c] sm:$0xf]
  %v39 = vld [vmem:[%s1 + $0x20] sm:$0xf]
  %v40 = vld [vmem:[%s1 + $0x24] sm:$0xf]
  %v41 = vld [vmem:[%s1 + $0x28] sm:$0xf]
  %v42 = vld [vmem:[%s1 + $0x2c] sm:$0xf]
  %v43 = vld [vmem:[%s1 + $0x30] sm:$0xf]
  %v44 = vld [vmem:[%s1 + $0x34] sm:$0xf]
  %v45 = vld [vmem:[%s1 + $0x38] sm:$0xf]
  %v46 = vld [vmem:[%s1 + $0x3c] sm:$0xf]
  %v47 = vld [vmem:[%s1 + $0x40] sm:$0xf]
  %v48 = vld [vmem:[%s1 + $0x44] sm:$0xf]
  %v49 = vld [vmem:[%s1 + $0x48] sm:$0xf]
  %v50 = vld [vmem:[%s1 + $0x4c] sm:$0xf]
  %v51 = vld [vmem:[%s1 + $0x50] sm:$0xf]
  %v52 = vld [vmem:[%s1 + $0x54] sm:$0xf]
  %v53 = vld [vmem:[%s1 + $0x58] sm:$0xf]
  %v54 = vld [vmem:[%s1 + $0x5c] sm:$0xf]
  %v55 = vld [vmem:[%s1 + $0x60] sm:$0xf]
  %v56 = vld [vmem:[%s1 + $0x64] sm:$0xf]
  %v57 = vld [vmem:[%s1 + $0x68] sm:$0xf]
  %v58 = vld [vmem:[%s1 + $0x6c] sm:$0xf]
  %v59 = vld [vmem:[%s1 + $0x70] sm:$0xf]
  %v60 = vld [vmem:[%s1 + $0x74] sm:$0xf]
  %v61 = vld [vmem:[%s1 + $0x78] sm:$0xf]
  %v62 = vld [vmem:[%s1 + $0x7c] sm:$0xf]
  %v63 = vld [vmem:[%s1 + $0x80] sm:$0xf]
  %v64 = vld [vmem:[%s1 + $0x84] sm:$0xf]
  %v65 = vld [vmem:[%s1 + $0x88] sm:$0xf]
  %v66 = vld [vmem:[%s1 + $0x8c] sm:$0xf]
  %v67 = vld [vmem:[%s1 + $0x90] sm:$0xf]
  %v68 = vld [vmem:[%s1 + $0x94] sm:$0xf]
  %v69 = vld [vmem:[%s1 + $0x98] sm:$0xf]
  %v70 = vld [vmem:[%s1 + $0x9c] sm:$0xf]
  %v71 = vld [vmem:[%s1 + $0xa0] sm:$0xf]
  %v72 = vld [vmem:[%s1 + $0xa4] sm:$0xf]
  %v73 = vld [vmem:[%s1 + $0xa8] sm:$0xf]
  %v74 = vld [vmem:[%s1 + $0xac] sm:$0xf]
  %v75 = vld [vmem:[%s1 + $0xb0] sm:$0xf]
  %v76 = vld [vmem:[%s1 + $0xb4] sm:$0xf]
  %v77 = vld [vmem:[%s1 + $0xb8] sm:$0xf]
  %v78 = vld [vmem:[%s1 + $0xbc] sm:$0xf]
  %v79 = vld [vmem:[%s1 + $0xc0] sm:$0xf]
  %v80 = vld [vmem:[%s1 + $0xc4] sm:$0xf]
  %v81 = vld [vmem:[%s1 + $0xc8] sm:$0xf]
  %v82 = vld [vmem:[%s1 + $0xcc] sm:$0xf]
  %v83 = vld [vmem:[%s1 + $0xd0] sm:$0xf]
  %v84 = vld [vmem:[%s1 + $0xd4] sm:$0xf]
  %v85 = vld [vmem:[%s1 + $0xd8] sm:$0xf]
  %v86 = vld [vmem:[%s1 + $0xdc] sm:$0xf]
  %v87 = vld [vmem:[%s1 + $0xe0] sm:$0xf]
  %v88 = vld [vmem:[%s1 + $0xe4] sm:$0xf]
  %v89 = vld [vmem:[%s1 + $0xe8] sm:$0xf]
  %v90 = vld [vmem:[%s1 + $0xec] sm:$0xf]
  %v91 = vld [vmem:[%s1 + $0xf0] sm:$0xf]
  %v92 = vld [vmem:[%s1 + $0xf4] sm:$0xf]
  %v93 = vld [vmem:[%s1 + $0xf8] sm:$0xf]
  %v94 = vld [vmem:[%s1 + $0xfc] sm:$0xf]
  %v95 = vld [vmem:[%s1 + $0x100] sm:$0xf]
  %v96 = vld [vmem:[%s1 + $0x104] sm:$0xf]
  %v97 = vld [vmem:[%s1 + $0x108] sm:$0xf]
  %v98 = vld [vmem:[%s1 + $0x10c] sm:$0xf]
  %v99 = vld [vmem:[%s1 + $0x110] sm:$0xf]
  %v100 = vld [vmem:[%s1 + $0x114] sm:$0xf]
  %v101 = vld [vmem:[%s1 + $0x118] sm:$0xf]
  %v102 = vld [vmem:[%s1 + $0x11c] sm:$0xf]
  %v103 = vld [vmem:[%s1 + $0x120] sm:$0xf]
  %v104 = vld [vmem:[%s1 + $0x124] sm:$0xf]
  %v105 = vld [vmem:[%s1 + $0x128] sm:$0xf]
  %v106 = vld [vmem:[%s1 + $0x12c] sm:$0xf]
  %v107 = vld [vmem:[%s1 + $0x130] sm:$0xf]
  %v108 = vld [vmem:[%s1 + $0x134] sm:$0xf]
  %v109 = vld [vmem:[%s1 + $0x138] sm:$0xf]
  %v110 = vld [vmem:[%s1 + $0x13c] sm:$0xf]
  %v111 = vld [vmem:[%s1 + $0x140] sm:$0xf]
  %v112 = vld [vmem:[%s1 + $0x144] sm:$0xf]
  %v113 = vld [vmem:[%s1 + $0x148] sm:$0xf]
  %v114 = vld [vmem:[%s1 + $0x14c] sm:$0xf]
  %v115 = vld [vmem:[%s1 + $0x150] sm:$0xf]
  %v116 = vld [vmem:[%s1 + $0x154] sm:$0xf]
  %v117 = vld [vmem:[%s1 + $0x158] sm:$0xf]
  %v118 = vld [vmem:[%s1 + $0x15c] sm:$0xf]
  %v119 = vld [vmem:[%s1 + $0x160] sm:$0xf]
  %v120 = vld [vmem:[%s1 + $0x164] sm:$0xf]
  %v121 = vld [vmem:[%s1 + $0x168] sm:$0xf]
  %v122 = vld [vmem:[%s1 + $0x16c] sm:$0xf]
  %v123 = vld [vmem:[%s1 + $0x170] sm:$0xf]
  %v124 = vld [vmem:[%s1 + $0x174] sm:$0xf]
  %v125 = vld [vmem:[%s1 + $0x178] sm:$0xf]
  %v126 = vld [vmem:[%s1 + $0x17c] sm:$0xf]
  %v127 = vld [vmem:[%s1 + $0x180] sm:$0xf]
  %v128 = vld [vmem:[%s1 + $0x184] sm:$0xf]
  %v129 = vld [vmem:[%s1 + $0x188] sm:$0xf]
  %v130 = vld [vmem:[%s1 + $0x18c] sm:$0xf]
  %v131 = vld [vmem:[%s1 + $0x190] sm:$0xf]
  %v132 = vld [vmem:[%s1 + $0x194] sm:$0xf]
  %v133 = vld [vmem:[%s1 + $0x198] sm:$0xf]
  %v134 = vld [vmem:[%s1 + $0x19c] sm:$0xf]
  %v135 = vld [vmem:[%s1 + $0x1a0] sm:$0xf]
  %v136 = vld [vmem:[%s1 + $0x1a4] sm:$0xf]
  %v137 = vld [vmem:[%s1 + $0x1a8] sm:$0xf]
  %v138 = vld [vmem:[%s1 + $0x1ac] sm:$0xf]
  %v139 = vld [vmem:[%s1 + $0x1b0] sm:$0xf]
  %v140 = vld [vmem:[%s1 + $0x1b4] sm:$0xf]
  %v141 = vld [vmem:[%s1 + $0x1b8] sm:$0xf]
  %v142 = vld [vmem:[%s1 + $0x1bc] sm:$0xf]
  %v143 = vld [vmem:[%s1 + $0x1c0] sm:$0xf]
  %v144 = vld [vmem:[%s1 + $0x1c4] sm:$0xf]
  %v145 = vld [vmem:[%s1 + $0x1c8] sm:$0xf]
  %v146 = vld [vmem:[%s1 + $0x1cc] sm:$0xf]
  %v147 = vld [vmem:[%s1 + $0x1d0] sm:$0xf]
  %v148 = vld [vmem:[%s1 + $0x1d4] sm:$0xf]
  %v149 = vld [vmem:[%s1 + $0x1d8] sm:$0xf]
  %v150 = vld [vmem:[%s1 + $0x1dc] sm:$0xf]
  %v151 = vld [vmem:[%s1 + $0x1e0] sm:$0xf]
  %v152 = vld [vmem:[%s1 + $0x1e4] sm:$0xf]
  %v153 = vld [vmem:[%s1 + $0x1e8] sm:$0xf]
  %v154 = vld [vmem:[%s1 + $0x1ec] sm:$0xf]
  %v155 = vld [vmem:[%s1 + $0x1f0] sm:$0xf]
  %v156 = vld [vmem:[%s1 + $0x1f4] sm:$0xf]
  %v157 = vld [vmem:[%s1 + $0x1f8] sm:$0xf]
  %v158 = vld [vmem:[%s1 + $0x1fc] sm:$0xf]
  %v159 = vld [vmem:[%s2] sm:$0x1]
  %v161 = vlaneseq
  %v162 = vshrl.u32 %v161, 7
  %v163 = vsub.s32 0, %v162
  %v164 = vrot.slane %v159, %v163
  %v170 = vunpack.c.l.b16 %v27
  %v171 = vunpack.c.h.b16 %v27
  %v172 = vunpack.c.l.b16 %v28
  %v173 = vunpack.c.h.b16 %v28
  %v174 = vunpack.c.l.b16 %v29
  %v175 = vunpack.c.h.b16 %v29
  %v176 = vunpack.c.l.b16 %v30
  %v177 = vunpack.c.h.b16 %v30
  %v178 = vpack.c.b16 %v170, %v170
  %v179 = vpack.c.b16 %v171, %v171
  %v180 = vpack.c.b16 %v172, %v172
  %v181 = vpack.c.b16 %v173, %v173
  %v182 = vpack.c.b16 %v174, %v174
  %v183 = vpack.c.b16 %v175, %v175
  %v184 = vpack.c.b16 %v176, %v176
  %v185 = vpack.c.b16 %v177, %v177
  %v322 = vunpack.c.l.b16 %v31
  %v323 = vunpack.c.l.b16 %v32
  %v324 = vunpack.c.l.b16 %v33
  %v325 = vunpack.c.l.b16 %v34
  %v326 = vunpack.c.l.b16 %v35
  %v327 = vunpack.c.l.b16 %v36
  %v328 = vunpack.c.l.b16 %v37
  %v329 = vunpack.c.l.b16 %v38
  %v330 = vunpack.c.l.b16 %v39
  %v331 = vunpack.c.l.b16 %v40
  %v332 = vunpack.c.l.b16 %v41
  %v333 = vunpack.c.l.b16 %v42
  %v334 = vunpack.c.l.b16 %v43
  %v335 = vunpack.c.l.b16 %v44
  %v336 = vunpack.c.l.b16 %v45
  %v337 = vunpack.c.l.b16 %v46
  %v338 = vunpack.c.l.b16 %v47
  %v339 = vunpack.c.l.b16 %v48
  %v340 = vunpack.c.l.b16 %v49
  %v341 = vunpack.c.l.b16 %v50
  %v342 = vunpack.c.l.b16 %v51
  %v343 = vunpack.c.l.b16 %v52
  %v344 = vunpack.c.l.b16 %v53
  %v345 = vunpack.c.l.b16 %v54
  %v346 = vunpack.c.l.b16 %v55
  %v347 = vunpack.c.l.b16 %v56
  %v348 = vunpack.c.l.b16 %v57
  %v349 = vunpack.c.l.b16 %v58
  %v350 = vunpack.c.l.b16 %v59
  %v351 = vunpack.c.l.b16 %v60
  %v352 = vunpack.c.l.b16 %v61
  %v353 = vunpack.c.l.b16 %v62
  %v354 = vunpack.c.l.b16 %v63
  %v355 = vunpack.c.l.b16 %v64
  %v356 = vunpack.c.l.b16 %v65
  %v357 = vunpack.c.l.b16 %v66
  %v358 = vunpack.c.l.b16 %v67
  %v359 = vunpack.c.l.b16 %v68
  %v360 = vunpack.c.l.b16 %v69
  %v361 = vunpack.c.l.b16 %v70
  %v362 = vunpack.c.l.b16 %v71
  %v363 = vunpack.c.l.b16 %v72
  %v364 = vunpack.c.l.b16 %v73
  %v365 = vunpack.c.l.b16 %v74
  %v366 = vunpack.c.l.b16 %v75
  %v367 = vunpack.c.l.b16 %v76
  %v368 = vunpack.c.l.b16 %v77
  %v369 = vunpack.c.l.b16 %v78
  %v370 = vunpack.c.l.b16 %v79
  %v371 = vunpack.c.l.b16 %v80
  %v372 = vunpack.c.l.b16 %v81
  %v373 = vunpack.c.l.b16 %v82
  %v374 = vunpack.c.l.b16 %v83
  %v375 = vunpack.c.l.b16 %v84
  %v376 = vunpack.c.l.b16 %v85
  %v377 = vunpack.c.l.b16 %v86
  %v378 = vunpack.c.l.b16 %v87
  %v379 = vunpack.c.l.b16 %v88
  %v380 = vunpack.c.l.b16 %v89
  %v381 = vunpack.c.l.b16 %v90
  %v382 = vunpack.c.l.b16 %v91
  %v383 = vunpack.c.l.b16 %v92
  %v384 = vunpack.c.l.b16 %v93
  %v385 = vunpack.c.l.b16 %v94
  %v386 = vunpack.c.l.b16 %v95
  %v387 = vunpack.c.l.b16 %v96
  %v388 = vunpack.c.l.b16 %v97
  %v389 = vunpack.c.l.b16 %v98
  %v390 = vunpack.c.l.b16 %v99
  %v391 = vunpack.c.l.b16 %v100
  %v392 = vunpack.c.l.b16 %v101
  %v393 = vunpack.c.l.b16 %v102
  %v394 = vunpack.c.l.b16 %v103
  %v395 = vunpack.c.l.b16 %v104
  %v396 = vunpack.c.l.b16 %v105
  %v397 = vunpack.c.l.b16 %v106
  %v398 = vunpack.c.l.b16 %v107
  %v399 = vunpack.c.l.b16 %v108
  %v400 = vunpack.c.l.b16 %v109
  %v401 = vunpack.c.l.b16 %v110
  %v402 = vunpack.c.l.b16 %v111
  %v403 = vunpack.c.l.b16 %v112
  %v404 = vunpack.c.l.b16 %v113
  %v405 = vunpack.c.l.b16 %v114
  %v406 = vunpack.c.l.b16 %v115
  %v407 = vunpack.c.l.b16 %v116
  %v408 = vunpack.c.l.b16 %v117
  %v409 = vunpack.c.l.b16 %v118
  %v410 = vunpack.c.l.b16 %v119
  %v411 = vunpack.c.l.b16 %v120
  %v412 = vunpack.c.l.b16 %v121
  %v413 = vunpack.c.l.b16 %v122
  %v414 = vunpack.c.l.b16 %v123
  %v415 = vunpack.c.l.b16 %v124
  %v416 = vunpack.c.l.b16 %v125
  %v417 = vunpack.c.l.b16 %v126
  %v418 = vunpack.c.l.b16 %v127
  %v419 = vunpack.c.l.b16 %v128
  %v420 = vunpack.c.l.b16 %v129
  %v421 = vunpack.c.l.b16 %v130
  %v422 = vunpack.c.l.b16 %v131
  %v423 = vunpack.c.l.b16 %v132
  %v424 = vunpack.c.l.b16 %v133
  %v425 = vunpack.c.l.b16 %v134
  %v426 = vunpack.c.l.b16 %v135
  %v427 = vunpack.c.l.b16 %v136
  %v428 = vunpack.c.l.b16 %v137
  %v429 = vunpack.c.l.b16 %v138
  %v430 = vunpack.c.l.b16 %v139
  %v431 = vunpack.c.l.b16 %v140
  %v432 = vunpack.c.l.b16 %v141
  %v433 = vunpack.c.l.b16 %v142
  %v434 = vunpack.c.l.b16 %v143
  %v435 = vunpack.c.l.b16 %v144
  %v436 = vunpack.c.l.b16 %v145
  %v437 = vunpack.c.l.b16 %v146
  %v438 = vunpack.c.l.b16 %v147
  %v439 = vunpack.c.l.b16 %v148
  %v440 = vunpack.c.l.b16 %v149
  %v441 = vunpack.c.l.b16 %v150
  %v442 = vunpack.c.l.b16 %v151
  %v443 = vunpack.c.l.b16 %v152
  %v444 = vunpack.c.l.b16 %v153
  %v445 = vunpack.c.l.b16 %v154
  %v446 = vunpack.c.l.b16 %v155
  %v447 = vunpack.c.l.b16 %v156
  %v448 = vunpack.c.l.b16 %v157
  %v449 = vunpack.c.l.b16 %v158
  %v450 = vpack.c.b16 %v323, %v322
  %v451 = vpack.c.b16 %v325, %v324
  %v452 = vpack.c.b16 %v327, %v326
  %v453 = vpack.c.b16 %v329, %v328
  %v454 = vpack.c.b16 %v331, %v330
  %v455 = vpack.c.b16 %v333, %v332
  %v456 = vpack.c.b16 %v335, %v334
  %v457 = vpack.c.b16 %v337, %v336
  %v458 = vpack.c.b16 %v339, %v338
  %v459 = vpack.c.b16 %v341, %v340
  %v460 = vpack.c.b16 %v343, %v342
  %v461 = vpack.c.b16 %v345, %v344
  %v462 = vpack.c.b16 %v347, %v346
  %v463 = vpack.c.b16 %v349, %v348
  %v464 = vpack.c.b16 %v351, %v350
  %v465 = vpack.c.b16 %v353, %v352
  %v466 = vpack.c.b16 %v355, %v354
  %v467 = vpack.c.b16 %v357, %v356
  %v468 = vpack.c.b16 %v359, %v358
  %v469 = vpack.c.b16 %v361, %v360
  %v470 = vpack.c.b16 %v363, %v362
  %v471 = vpack.c.b16 %v365, %v364
  %v472 = vpack.c.b16 %v367, %v366
  %v473 = vpack.c.b16 %v369, %v368
  %v474 = vpack.c.b16 %v371, %v370
  %v475 = vpack.c.b16 %v373, %v372
  %v476 = vpack.c.b16 %v375, %v374
  %v477 = vpack.c.b16 %v377, %v376
  %v478 = vpack.c.b16 %v379, %v378
  %v479 = vpack.c.b16 %v381, %v380
  %v480 = vpack.c.b16 %v383, %v382
  %v481 = vpack.c.b16 %v385, %v384
  %v482 = vpack.c.b16 %v387, %v386
  %v483 = vpack.c.b16 %v389, %v388
  %v484 = vpack.c.b16 %v391, %v390
  %v485 = vpack.c.b16 %v393, %v392
  %v486 = vpack.c.b16 %v395, %v394
  %v487 = vpack.c.b16 %v397, %v396
  %v488 = vpack.c.b16 %v399, %v398
  %v489 = vpack.c.b16 %v401, %v400
  %v490 = vpack.c.b16 %v403, %v402
  %v491 = vpack.c.b16 %v405, %v404
  %v492 = vpack.c.b16 %v407, %v406
  %v493 = vpack.c.b16 %v409, %v408
  %v494 = vpack.c.b16 %v411, %v410
  %v495 = vpack.c.b16 %v413, %v412
  %v496 = vpack.c.b16 %v415, %v414
  %v497 = vpack.c.b16 %v417, %v416
  %v498 = vpack.c.b16 %v419, %v418
  %v499 = vpack.c.b16 %v421, %v420
  %v500 = vpack.c.b16 %v423, %v422
  %v501 = vpack.c.b16 %v425, %v424
  %v502 = vpack.c.b16 %v427, %v426
  %v503 = vpack.c.b16 %v429, %v428
  %v504 = vpack.c.b16 %v431, %v430
  %v505 = vpack.c.b16 %v433, %v432
  %v506 = vpack.c.b16 %v435, %v434
  %v507 = vpack.c.b16 %v437, %v436
  %v508 = vpack.c.b16 %v439, %v438
  %v509 = vpack.c.b16 %v441, %v440
  %v510 = vpack.c.b16 %v443, %v442
  %v511 = vpack.c.b16 %v445, %v444
  %v512 = vpack.c.b16 %v447, %v446
  %v513 = vpack.c.b16 %v449, %v448
  %578 = vmatprep.subr.bf16.mxu0 0
  %579 = vmatpush1.bf16.msra.mxu0 %v457
  %580 = vmatprep.subr.bf16.mxu0 0
  %581 = vmatpush1.bf16.msra.mxu0 %v456
  %582 = vmatprep.subr.bf16.mxu0 0
  %583 = vmatpush1.bf16.msra.mxu0 %v455
  %584 = vmatprep.subr.bf16.mxu0 0
  %585 = vmatpush1.bf16.msra.mxu0 %v454
  %586 = vmatprep.subr.bf16.mxu0 0
  %587 = vmatpush1.bf16.msra.mxu0 %v453
  %588 = vmatprep.subr.bf16.mxu0 0
  %589 = vmatpush1.bf16.msra.mxu0 %v452
  %590 = vmatprep.subr.bf16.mxu0 0
  %591 = vmatpush1.bf16.msra.mxu0 %v451
  %592 = vmatprep.subr.bf16.mxu0 0
  %593 = vmatpush1.bf16.msra.mxu0 %v450
  %594 = vmatprep.subr.bf16.mxu0 0
  %595 = vmatpush2.bf16.msra.mxu0 %v465
  %596 = vmatprep.subr.bf16.mxu0 0
  %597 = vmatpush2.bf16.msra.mxu0 %v464
  %598 = vmatprep.subr.bf16.mxu0 0
  %599 = vmatpush2.bf16.msra.mxu0 %v463
  %600 = vmatprep.subr.bf16.mxu0 0
  %601 = vmatpush2.bf16.msra.mxu0 %v462
  %602 = vmatprep.subr.bf16.mxu0 0
  %603 = vmatpush2.bf16.msra.mxu0 %v461
  %604 = vmatprep.subr.bf16.mxu0 0
  %605 = vmatpush2.bf16.msra.mxu0 %v460
  %606 = vmatprep.subr.bf16.mxu0 0
  %607 = vmatpush2.bf16.msra.mxu0 %v459
  %608 = vmatprep.subr.bf16.mxu0 0
  %609 = vmatpush2.bf16.msra.mxu0 %v458
  %610 = vmatprep.mubr.bf16.mxu0 %v179
  %611 = vmatmul.mubr.bf16.gmra.mxu0 %v178
  %v612 = vpop.f32.mrf.mxu0
  %v613 = vadd.f32 %v164, %v612
  %v614 = vpop.f32.mrf.mxu0
  %v615 = vpop.f32.mrf.mxu0
  %v616 = vpop.f32.mrf.mxu0
  %617 = vdwg.mxu0
  %618 = vmatprep.subr.bf16.mxu0 0
  %619 = vmatpush1.bf16.msra.mxu0 %v473
  %620 = vmatprep.subr.bf16.mxu0 0
  %621 = vmatpush1.bf16.msra.mxu0 %v472
  %622 = vmatprep.subr.bf16.mxu0 0
  %623 = vmatpush1.bf16.msra.mxu0 %v471
  %624 = vmatprep.subr.bf16.mxu0 0
  %625 = vmatpush1.bf16.msra.mxu0 %v470
  %626 = vmatprep.subr.bf16.mxu0 0
  %627 = vmatpush1.bf16.msra.mxu0 %v469
  %628 = vmatprep.subr.bf16.mxu0 0
  %629 = vmatpush1.bf16.msra.mxu0 %v468
  %630 = vmatprep.subr.bf16.mxu0 0
  %631 = vmatpush1.bf16.msra.mxu0 %v467
  %632 = vmatprep.subr.bf16.mxu0 0
  %633 = vmatpush1.bf16.msra.mxu0 %v466
  %634 = vmatprep.subr.bf16.mxu0 0
  %635 = vmatpush2.bf16.msra.mxu0 %v481
  %636 = vmatprep.subr.bf16.mxu0 0
  %637 = vmatpush2.bf16.msra.mxu0 %v480
  %638 = vmatprep.subr.bf16.mxu0 0
  %639 = vmatpush2.bf16.msra.mxu0 %v479
  %640 = vmatprep.subr.bf16.mxu0 0
  %641 = vmatpush2.bf16.msra.mxu0 %v478
  %642 = vmatprep.subr.bf16.mxu0 0
  %643 = vmatpush2.bf16.msra.mxu0 %v477
  %644 = vmatprep.subr.bf16.mxu0 0
  %645 = vmatpush2.bf16.msra.mxu0 %v476
  %646 = vmatprep.subr.bf16.mxu0 0
  %647 = vmatpush2.bf16.msra.mxu0 %v475
  %648 = vmatprep.subr.bf16.mxu0 0
  %649 = vmatpush2.bf16.msra.mxu0 %v474
  %650 = vmatprep.mubr.bf16.mxu0 %v181
  %651 = vmatmul.mubr.bf16.gmra.mxu0 %v180
  %v652 = vpop.f32.mrf.mxu0
  %v653 = vadd.f32 %v613, %v652
  %v654 = vpop.f32.mrf.mxu0
  %v655 = vpop.f32.mrf.mxu0
  %v656 = vpop.f32.mrf.mxu0
  %657 = vdwg.mxu0
  %658 = vmatprep.subr.bf16.mxu0 0
  %659 = vmatpush1.bf16.msra.mxu0 %v489
  %660 = vmatprep.subr.bf16.mxu0 0
  %661 = vmatpush1.bf16.msra.mxu0 %v488
  %662 = vmatprep.subr.bf16.mxu0 0
  %663 = vmatpush1.bf16.msra.mxu0 %v487
  %664 = vmatprep.subr.bf16.mxu0 0
  %665 = vmatpush1.bf16.msra.mxu0 %v486
  %666 = vmatprep.subr.bf16.mxu0 0
  %667 = vmatpush1.bf16.msra.mxu0 %v485
  %668 = vmatprep.subr.bf16.mxu0 0
  %669 = vmatpush1.bf16.msra.mxu0 %v484
  %670 = vmatprep.subr.bf16.mxu0 0
  %671 = vmatpush1.bf16.msra.mxu0 %v483
  %672 = vmatprep.subr.bf16.mxu0 0
  %673 = vmatpush1.bf16.msra.mxu0 %v482
  %674 = vmatprep.subr.bf16.mxu0 0
  %675 = vmatpush2.bf16.msra.mxu0 %v497
  %676 = vmatprep.subr.bf16.mxu0 0
  %677 = vmatpush2.bf16.msra.mxu0 %v496
  %678 = vmatprep.subr.bf16.mxu0 0
  %679 = vmatpush2.bf16.msra.mxu0 %v495
  %680 = vmatprep.subr.bf16.mxu0 0
  %681 = vmatpush2.bf16.msra.mxu0 %v494
  %682 = vmatprep.subr.bf16.mxu0 0
  %683 = vmatpush2.bf16.msra.mxu0 %v493
  %684 = vmatprep.subr.bf16.mxu0 0
  %685 = vmatpush2.bf16.msra.mxu0 %v492
  %686 = vmatprep.subr.bf16.mxu0 0
  %687 = vmatpush2.bf16.msra.mxu0 %v491
  %688 = vmatprep.subr.bf16.mxu0 0
  %689 = vmatpush2.bf16.msra.mxu0 %v490
  %690 = vmatprep.mubr.bf16.mxu0 %v183
  %691 = vmatmul.mubr.bf16.gmra.mxu0 %v182
  %v692 = vpop.f32.mrf.mxu0
  %v693 = vadd.f32 %v653, %v692
  %v694 = vpop.f32.mrf.mxu0
  %v695 = vpop.f32.mrf.mxu0
  %v696 = vpop.f32.mrf.mxu0
  %697 = vdwg.mxu0
  %698 = vmatprep.subr.bf16.mxu0 0
  %699 = vmatpush1.bf16.msra.mxu0 %v505
  %700 = vmatprep.subr.bf16.mxu0 0
  %701 = vmatpush1.bf16.msra.mxu0 %v504
  %702 = vmatprep.subr.bf16.mxu0 0
  %703 = vmatpush1.bf16.msra.mxu0 %v503
  %704 = vmatprep.subr.bf16.mxu0 0
  %705 = vmatpush1.bf16.msra.mxu0 %v502
  %706 = vmatprep.subr.bf16.mxu0 0
  %707 = vmatpush1.bf16.msra.mxu0 %v501
  %708 = vmatprep.subr.bf16.mxu0 0
  %709 = vmatpush1.bf16.msra.mxu0 %v500
  %710 = vmatprep.subr.bf16.mxu0 0
  %711 = vmatpush1.bf16.msra.mxu0 %v499
  %712 = vmatprep.subr.bf16.mxu0 0
  %713 = vmatpush1.bf16.msra.mxu0 %v498
  %714 = vmatprep.subr.bf16.mxu0 0
  %715 = vmatpush2.bf16.msra.mxu0 %v513
  %716 = vmatprep.subr.bf16.mxu0 0
  %717 = vmatpush2.bf16.msra.mxu0 %v512
  %718 = vmatprep.subr.bf16.mxu0 0
  %719 = vmatpush2.bf16.msra.mxu0 %v511
  %720 = vmatprep.subr.bf16.mxu0 0
  %721 = vmatpush2.bf16.msra.mxu0 %v510
  %722 = vmatprep.subr.bf16.mxu0 0
  %723 = vmatpush2.bf16.msra.mxu0 %v509
  %724 = vmatprep.subr.bf16.mxu0 0
  %725 = vmatpush2.bf16.msra.mxu0 %v508
  %726 = vmatprep.subr.bf16.mxu0 0
  %727 = vmatpush2.bf16.msra.mxu0 %v507
  %728 = vmatprep.subr.bf16.mxu0 0
  %729 = vmatpush2.bf16.msra.mxu0 %v506
  %730 = vmatprep.mubr.bf16.mxu0 %v185
  %731 = vmatmul.mubr.bf16.gmra.mxu0 %v184
  %v732 = vpop.f32.mrf.mxu0
  %v733 = vadd.f32 %v693, %v732
  %v734 = vpop.f32.mrf.mxu0
  %v735 = vpop.f32.mrf.mxu0
  %v736 = vpop.f32.mrf.mxu0
  %737 = vdwg.mxu0
  %v738 = vtanh.pop %v733
  %v739 = vpack.c.bf16 %v738, %v738
  %v740 = vld [vmem:[%s3] sm:$0xf]
  %v741 = vld [vmem:[%s3 + $0x4] sm:$0xf]
  %v742 = vld [vmem:[%s3 + $0x8] sm:$0xf]
  %v743 = vld [vmem:[%s3 + $0xc] sm:$0xf]
  %v744 = vld [vmem:[%s3 + $0x10] sm:$0xf]
  %v745 = vld [vmem:[%s3 + $0x14] sm:$0xf]
  %v746 = vld [vmem:[%s3 + $0x18] sm:$0xf]
  %v747 = vld [vmem:[%s3 + $0x1c] sm:$0xf]
  %v748 = vld [vmem:[%s3 + $0x20] sm:$0xf]
  %v749 = vld [vmem:[%s3 + $0x24] sm:$0xf]
  %v750 = vld [vmem:[%s3 + $0x28] sm:$0xf]
  %v751 = vld [vmem:[%s3 + $0x2c] sm:$0xf]
  %v752 = vld [vmem:[%s3 + $0x30] sm:$0xf]
  %v753 = vld [vmem:[%s3 + $0x34] sm:$0xf]
  %v754 = vld [vmem:[%s3 + $0x38] sm:$0xf]
  %v755 = vld [vmem:[%s3 + $0x3c] sm:$0xf]
  %v756 = vld [vmem:[%s4] sm:$0x1]
  %v758 = vlaneseq
  %v759 = vshrl.u32 %v758, 7
  %v760 = vsub.s32 0, %v759
  %v761 = vrot.slane %v756, %v760
  %v779 = vunpack.c.l.b16 %v740
  %v780 = vunpack.c.l.b16 %v741
  %v781 = vunpack.c.l.b16 %v742
  %v782 = vunpack.c.l.b16 %v743
  %v783 = vunpack.c.l.b16 %v744
  %v784 = vunpack.c.l.b16 %v745
  %v785 = vunpack.c.l.b16 %v746
  %v786 = vunpack.c.l.b16 %v747
  %v787 = vunpack.c.l.b16 %v748
  %v788 = vunpack.c.l.b16 %v749
  %v789 = vunpack.c.l.b16 %v750
  %v790 = vunpack.c.l.b16 %v751
  %v791 = vunpack.c.l.b16 %v752
  %v792 = vunpack.c.l.b16 %v753
  %v793 = vunpack.c.l.b16 %v754
  %v794 = vunpack.c.l.b16 %v755
  %v795 = vpack.c.b16 %v780, %v779
  %v796 = vpack.c.b16 %v782, %v781
  %v797 = vpack.c.b16 %v784, %v783
  %v798 = vpack.c.b16 %v786, %v785
  %v799 = vpack.c.b16 %v788, %v787
  %v800 = vpack.c.b16 %v790, %v789
  %v801 = vpack.c.b16 %v792, %v791
  %v802 = vpack.c.b16 %v794, %v793
  %811 = vmatprep.subr.bf16.mxu0 0
  %812 = vmatpush1.bf16.msra.mxu0 %v802
  %813 = vmatprep.subr.bf16.mxu0 0
  %814 = vmatpush1.bf16.msra.mxu0 %v801
  %815 = vmatprep.subr.bf16.mxu0 0
  %816 = vmatpush1.bf16.msra.mxu0 %v800
  %817 = vmatprep.subr.bf16.mxu0 0
  %818 = vmatpush1.bf16.msra.mxu0 %v799
  %819 = vmatprep.subr.bf16.mxu0 0
  %820 = vmatpush1.bf16.msra.mxu0 %v798
  %821 = vmatprep.subr.bf16.mxu0 0
  %822 = vmatpush1.bf16.msra.mxu0 %v797
  %823 = vmatprep.subr.bf16.mxu0 0
  %824 = vmatpush1.bf16.msra.mxu0 %v796
  %825 = vmatprep.subr.bf16.mxu0 0
  %826 = vmatpush1.bf16.msra.mxu0 %v795
  %827 = vmatprep.subr.bf16.mxu0 0
  %828 = vmatpush2.bf16.msra.mxu0 0
  %829 = vmatprep.subr.bf16.mxu0 0
  %830 = vmatpush2.bf16.msra.mxu0 0
  %831 = vmatprep.subr.bf16.mxu0 0
  %832 = vmatpush2.bf16.msra.mxu0 0
  %833 = vmatprep.subr.bf16.mxu0 0
  %834 = vmatpush2.bf16.msra.mxu0 0
  %835 = vmatprep.subr.bf16.mxu0 0
  %836 = vmatpush2.bf16.msra.mxu0 0
  %837 = vmatprep.subr.bf16.mxu0 0
  %838 = vmatpush2.bf16.msra.mxu0 0
  %839 = vmatprep.subr.bf16.mxu0 0
  %840 = vmatpush2.bf16.msra.mxu0 0
  %841 = vmatprep.subr.bf16.mxu0 0
  %842 = vmatpush2.bf16.msra.mxu0 0
  %843 = vmatprep.mubr.bf16.mxu0 0
  %844 = vmatmul.mubr.bf16.gmra.mxu0 %v739
  %v845 = vpop.f32.mrf.mxu0
  %v846 = vadd.f32 %v761, %v845
  %v847 = vpop.f32.mrf.mxu0
  %v848 = vpop.f32.mrf.mxu0
  %v849 = vpop.f32.mrf.mxu0
  %850 = vdwg.mxu0
  %v851 = vtanh.pop %v846
  %v852 = vpack.c.bf16 %v851, %v851
  %v853 = vld [vmem:[%s5] sm:$0xf]
  %v854 = vld [vmem:[%s5 + $0x4] sm:$0xf]
  %v855 = vld [vmem:[%s5 + $0x8] sm:$0xf]
  %v856 = vld [vmem:[%s5 + $0xc] sm:$0xf]
  %v857 = vld [vmem:[%s5 + $0x10] sm:$0xf]
  %v858 = vld [vmem:[%s5 + $0x14] sm:$0xf]
  %v859 = vld [vmem:[%s5 + $0x18] sm:$0xf]
  %v860 = vld [vmem:[%s5 + $0x1c] sm:$0xf]
  %v861 = vld [vmem:[%s5 + $0x20] sm:$0xf]
  %v862 = vld [vmem:[%s5 + $0x24] sm:$0xf]
  %v863 = vld [vmem:[%s5 + $0x28] sm:$0xf]
  %v864 = vld [vmem:[%s5 + $0x2c] sm:$0xf]
  %v865 = vld [vmem:[%s5 + $0x30] sm:$0xf]
  %v866 = vld [vmem:[%s5 + $0x34] sm:$0xf]
  %v867 = vld [vmem:[%s5 + $0x38] sm:$0xf]
  %v868 = vld [vmem:[%s5 + $0x3c] sm:$0xf]
  %v869 = vld [vmem:[%s6] sm:$0x1]
  %v871 = vlaneseq
  %v872 = vshrl.u32 %v871, 7
  %v873 = vsub.s32 0, %v872
  %v874 = vrot.slane %v869, %v873
  %v892 = vunpack.c.l.b16 %v853
  %v893 = vunpack.c.l.b16 %v854
  %v894 = vunpack.c.l.b16 %v855
  %v895 = vunpack.c.l.b16 %v856
  %v896 = vunpack.c.l.b16 %v857
  %v897 = vunpack.c.l.b16 %v858
  %v898 = vunpack.c.l.b16 %v859
  %v899 = vunpack.c.l.b16 %v860
  %v900 = vunpack.c.l.b16 %v861
  %v901 = vunpack.c.l.b16 %v862
  %v902 = vunpack.c.l.b16 %v863
  %v903 = vunpack.c.l.b16 %v864
  %v904 = vunpack.c.l.b16 %v865
  %v905 = vunpack.c.l.b16 %v866
  %v906 = vunpack.c.l.b16 %v867
  %v907 = vunpack.c.l.b16 %v868
  %v908 = vpack.c.b16 %v893, %v892
  %v909 = vpack.c.b16 %v895, %v894
  %v910 = vpack.c.b16 %v897, %v896
  %v911 = vpack.c.b16 %v899, %v898
  %v912 = vpack.c.b16 %v901, %v900
  %v913 = vpack.c.b16 %v903, %v902
  %v914 = vpack.c.b16 %v905, %v904
  %v915 = vpack.c.b16 %v907, %v906
  %924 = vmatprep.subr.bf16.mxu0 0
  %925 = vmatpush1.bf16.msra.mxu0 %v915
  %926 = vmatprep.subr.bf16.mxu0 0
  %927 = vmatpush1.bf16.msra.mxu0 %v914
  %928 = vmatprep.subr.bf16.mxu0 0
  %929 = vmatpush1.bf16.msra.mxu0 %v913
  %930 = vmatprep.subr.bf16.mxu0 0
  %931 = vmatpush1.bf16.msra.mxu0 %v912
  %932 = vmatprep.subr.bf16.mxu0 0
  %933 = vmatpush1.bf16.msra.mxu0 %v911
  %934 = vmatprep.subr.bf16.mxu0 0
  %935 = vmatpush1.bf16.msra.mxu0 %v910
  %936 = vmatprep.subr.bf16.mxu0 0
  %937 = vmatpush1.bf16.msra.mxu0 %v909
  %938 = vmatprep.subr.bf16.mxu0 0
  %939 = vmatpush1.bf16.msra.mxu0 %v908
  %940 = vmatprep.subr.bf16.mxu0 0
  %941 = vmatpush2.bf16.msra.mxu0 0
  %942 = vmatprep.subr.bf16.mxu0 0
  %943 = vmatpush2.bf16.msra.mxu0 0
  %944 = vmatprep.subr.bf16.mxu0 0
  %945 = vmatpush2.bf16.msra.mxu0 0
  %946 = vmatprep.subr.bf16.mxu0 0
  %947 = vmatpush2.bf16.msra.mxu0 0
  %948 = vmatprep.subr.bf16.mxu0 0
  %949 = vmatpush2.bf16.msra.mxu0 0
  %950 = vmatprep.subr.bf16.mxu0 0
  %951 = vmatpush2.bf16.msra.mxu0 0
  %952 = vmatprep.subr.bf16.mxu0 0
  %953 = vmatpush2.bf16.msra.mxu0 0
  %954 = vmatprep.subr.bf16.mxu0 0
  %955 = vmatpush2.bf16.msra.mxu0 0
  %956 = vmatprep.mubr.bf16.mxu0 0
  %957 = vmatmul.mubr.bf16.gmra.mxu0 %v852
  %v958 = vpop.f32.mrf.mxu0
  %v959 = vadd.f32 %v874, %v958
  %v960 = vpop.f32.mrf.mxu0
  %v961 = vpop.f32.mrf.mxu0
  %v962 = vpop.f32.mrf.mxu0
  %963 = vdwg.mxu0
  %v964 = vlaneseq
  %v965 = vand.u32 %v964, 127
  %vm966 = vcmp.lt.s32.totalorder %v965, 6
  %v967 = vsel %vm966, %v959, -1e+30
  %968 = vmax.xlane.f32.xlu0 %v967
  %v969 = vpop.xlane.xlu0 %968
  %v970 = vsub.f32 %v967, %v969
  %v971 = vmul.f32 %v970, 1.442695
  %v972 = vpow.pop %v971
  %v973 = vsel %vm966, %v972, 0.0
  %974 = vadd.xlane.f32.xlu0 %v973
  %v975 = vpop.xlane.xlu0 %974
  %v976 = vrcp.pop %v975
  %v977 = vmul.f32 %v973, %v976
  %978 = vst [vmem:[%s7] sm:$0xff] %v977
  // Predicated region
  $region30: #{actor_forward.7} parent=0 // pred_check
    _
  $region31: #{actor_forward.7} parent=0 // pred_check_branch
    %980 = sbr.rel (0) target = $region33
  $region32: #{actor_forward.7} parent=0 // pred_region
    _
  $region33: #{actor_forward.7} parent=0 // pred_fallthru
    _
  // Predicated region
  $region34: #{actor_forward.7} parent=0 // pred_check
    _
  $region35: #{actor_forward.7} parent=0 // pred_check_branch
    %982 = sbr.rel (0) target = $region37
  $region36: #{actor_forward.7} parent=0 // pred_region
    _
  $region37: #{actor_forward.7} parent=0 // pred_fallthru
    _

</llo_original>
